<compile_context>
chip_gen: v7x
topology: tpu7x:2x2x1
jax: 0.10.0
libtpu: 0.0.40
codegen_flags: <defaults>
</compile_context>

<pallas_src>
import jax
import jax.numpy as jnp
from jax.experimental import pallas as pl
from jax.experimental.pallas import tpu as pltpu


def _round_up(n, m):
    return ((n + m - 1) // m) * m


def make_pinn_kernel(input_size, out_size, *, use_bf16_sin=False,
                     vpu_fc1_threshold=8):
    """Build the fused feature-major forward kernel (static shapes)."""
    use_vpu_fc1 = input_size <= vpu_fc1_threshold
    use_vpu_fc4 = out_size == 1

    def _sin(z):
        if use_bf16_sin:
            # v6e/v7x only: bf16 VALU lanes ~2x the sin polynomial throughput.
            return jnp.sin(z.astype(jnp.bfloat16)).astype(jnp.float32)
        return jnp.sin(z)

    def kernel(x_ref,                    # (input_size, TILE_B)
               w1_ref, b1_ref,           # (hidden, in),     (hidden, 1)
               w2_ref, b2_ref,           # (hidden, hidden), (hidden, 1)
               w3_ref, b3_ref,           # (hidden, hidden), (hidden, 1)
               w4_ref, b4_ref,           # (hidden, 1) or (out, hidden); (out, 1)
               o_ref):                   # (out_size, TILE_B)
        x = x_ref[...].astype(jnp.float32)

        # Hoisted bias loads (read once per grid step).
        b1 = b1_ref[...]
        b2 = b2_ref[...]
        b3 = b3_ref[...]
        b4 = b4_ref[...]

        # --- fc1 + sin: z1 = W1^T x + b1 ---
        if use_vpu_fc1:
            # K tiny (e.g. 2): outer-product accumulate on the VPU.  Bias is
            # folded into the first MAC (no separate zero-init add pass).
            w1 = w1_ref[...]                       # (hidden, in)
            z1 = b1 + w1[:, 0:1] * x[0:1, :]       # -> (hidden, TILE_B)
            for k in range(1, input_size):         # static unroll, tiny K
                z1 = z1 + w1[:, k:k + 1] * x[k:k + 1, :]
        else:
            z1 = jnp.dot(w1_ref[...], x,
                         preferred_element_type=jnp.float32) + b1
        h1 = _sin(z1)

        # --- fc2 + sin (MXU, N = TILE_B lane-dense) ---
        h2 = _sin(jnp.dot(w2_ref[...], h1,
                          preferred_element_type=jnp.float32) + b2)

        # --- fc3 + sin ---
        h3 = _sin(jnp.dot(w3_ref[...], h2,
                          preferred_element_type=jnp.float32) + b3)

        # --- fc4 (no activation) ---
        if use_vpu_fc4:
            # out_size == 1: VPU multiply + sublane reduce instead of a
            # degenerate N=1 MXU matmul.
            w4 = w4_ref[...]                       # (hidden, 1)
            y = jnp.sum(h3 * w4, axis=0, keepdims=True) + b4   # (1, TILE_B)
        else:
            y = jnp.dot(w4_ref[...], h3,
                        preferred_element_type=jnp.float32) + b4

        o_ref[...] = y.astype(o_ref.dtype)

    return kernel


def brownian_pinn_forward(x, params, *, tile_b=8192, use_bf16_sin=False):
    """x: (batch, input_size) f32; params: dict with w1..w4 (in,out) and
    b1..b4 (1,out).  Returns (batch, out_size) f32."""
    batch, input_size = x.shape
    hidden_size = params["w1"].shape[1]
    out_size = params["w4"].shape[1]

    # Lane-dense batch tile: multiple of 128 (f32 lanes), capped for small
    # batches so tiny inputs stay a single grid step.
    tb = min(tile_b, _round_up(batch, 128))
    tb = _round_up(tb, 128)
    padded_batch = _round_up(batch, tb)

    # Feature-major layout: batch on the lane axis.
    xt = x.T                                              # (in, batch)
    if padded_batch != batch:
        xt = jnp.pad(xt, ((0, 0), (0, padded_batch - batch)))
    grid = (padded_batch // tb,)

    use_vpu_fc4 = out_size == 1
    kernel = make_pinn_kernel(input_size, out_size, use_bf16_sin=use_bf16_sin)

    # Pre-transposed weights/biases for the feature-major kernel.
    # (Layout plumbing only; in a real model these would be stored this way.)
    w1t = params["w1"].T                                  # (hidden, in)
    w2t = params["w2"].T                                  # (hidden, hidden)
    w3t = params["w3"].T                                  # (hidden, hidden)
    w4k = params["w4"] if use_vpu_fc4 else params["w4"].T # (hidden,1) / (out,hidden)
    b1t = params["b1"].T                                  # (hidden, 1)
    b2t = params["b2"].T
    b3t = params["b3"].T
    b4t = params["b4"].T                                  # (out, 1)

    def resident(arr):
        # Full-array block with a constant block index: fetched once, stays
        # resident in VMEM across all grid steps.
        return pl.BlockSpec(arr.shape, lambda i: (0, 0))

    out_t = pl.pallas_call(
        kernel,
        out_shape=jax.ShapeDtypeStruct((out_size, padded_batch), jnp.float32),
        grid=grid,
        in_specs=[
            pl.BlockSpec((input_size, tb), lambda i: (0, i)),  # streamed x^T
            resident(w1t), resident(b1t),
            resident(w2t), resident(b2t),
            resident(w3t), resident(b3t),
            resident(w4k), resident(b4t),
        ],
        out_specs=pl.BlockSpec((out_size, tb), lambda i: (0, i)),
        compiler_params=pltpu.CompilerParams(
            dimension_semantics=("parallel",),      # megacore sharding on v7x
            vmem_limit_bytes=32 * 1024 * 1024,      # ample: lane-dense blocks
        ),
    )(
        xt,
        w1t, b1t,
        w2t, b2t,
        w3t, b3t,
        w4k, b4t,
    )
    return out_t[:, :batch].T


def init_params(key, input_size, hidden_size, output_size):
    """Deterministic init mimicking nn.Linear's U(-1/sqrt(fan_in), 1/sqrt(fan_in))."""
    dims = [(input_size, hidden_size),
            (hidden_size, hidden_size),
            (hidden_size, hidden_size),
            (hidden_size, output_size)]
    params = {}
    for i, (fan_in, fan_out) in enumerate(dims, start=1):
        key, kw, kb = jax.random.split(key, 3)
        bound = 1.0 / jnp.sqrt(jnp.float32(fan_in))
        params[f"w{i}"] = jax.random.uniform(
            kw, (fan_in, fan_out), jnp.float32, minval=-bound, maxval=bound)
        params[f"b{i}"] = jax.random.uniform(
            kb, (1, fan_out), jnp.float32, minval=-bound, maxval=bound)
    return params


def reference_forward(x, p):
    h1 = jnp.sin(x @ p["w1"] + p["b1"])
    h2 = jnp.sin(h1 @ p["w2"] + p["b2"])
    h3 = jnp.sin(h2 @ p["w3"] + p["b3"])
    return h3 @ p["w4"] + p["b4"]


if __name__ == "__main__":
    input_size, hidden_size, output_size = 2, 32, 1

    key = jax.random.PRNGKey(0)
    key, kx1, kx2 = jax.random.split(key, 3)
    params = init_params(key, input_size, hidden_size, output_size)

    # Case 1: tiny batch (single grid step, small-batch tile cap).
    batch1 = 8
    x1 = jax.random.normal(kx1, (batch1, input_size), jnp.float32)
    y1 = jax.block_until_ready(brownian_pinn_forward(x1, params))
    y1_ref = reference_forward(x1, params)
    assert y1.shape == (batch1, output_size)
    assert jnp.allclose(y1, y1_ref, atol=1e-5, rtol=1e-5), "mismatch (batch=8)"

    # Case 2: non-multiple batch with multiple grid steps (padding + pipelining).
    batch2 = 1000
    x2 = jax.random.normal(kx2, (batch2, input_size), jnp.float32)
    y2 = jax.block_until_ready(brownian_pinn_forward(x2, params, tile_b=256))
    y2_ref = reference_forward(x2, params)
    assert y2.shape == (batch2, output_size)
    assert jnp.allclose(y2, y2_ref, atol=1e-5, rtol=1e-5), "mismatch (batch=1000)"

    print("KERNEL_OK")
</pallas_src>

<mosaic_0001>
module attributes {stable_mosaic.version = 11 : i64} {
  func.func @kernel(%arg0: i32, %arg1: memref<2x128xf32, #tpu.memory_space<vmem>>, %arg2: memref<32x2xf32, #tpu.memory_space<vmem>>, %arg3: memref<32x1xf32, #tpu.memory_space<vmem>>, %arg4: memref<32x32xf32, #tpu.memory_space<vmem>>, %arg5: memref<32x1xf32, #tpu.memory_space<vmem>>, %arg6: memref<32x32xf32, #tpu.memory_space<vmem>>, %arg7: memref<32x1xf32, #tpu.memory_space<vmem>>, %arg8: memref<32x1xf32, #tpu.memory_space<vmem>>, %arg9: memref<1x1xf32, #tpu.memory_space<vmem>>, %arg10: memref<1x128xf32, #tpu.memory_space<vmem>>) attributes {dimension_semantics = [#tpu.dimension_semantics<parallel>], iteration_bounds = array<i64: 1>, scalar_prefetch = 0 : i64, scratch_operands = 0 : i64, tpu.core_type = #tpu.core_type<tc>, window_params = [{transform_indices = @transform_0, window_bounds = array<i64: 2, 128>}, {pipeline_mode = #tpu.pipeline_mode<synchronous>, transform_indices = @transform_1, window_bounds = array<i64: 32, 2>}, {pipeline_mode = #tpu.pipeline_mode<synchronous>, transform_indices = @transform_2, window_bounds = array<i64: 32, 1>}, {pipeline_mode = #tpu.pipeline_mode<synchronous>, transform_indices = @transform_3, window_bounds = array<i64: 32, 32>}, {pipeline_mode = #tpu.pipeline_mode<synchronous>, transform_indices = @transform_4, window_bounds = array<i64: 32, 1>}, {pipeline_mode = #tpu.pipeline_mode<synchronous>, transform_indices = @transform_5, window_bounds = array<i64: 32, 32>}, {pipeline_mode = #tpu.pipeline_mode<synchronous>, transform_indices = @transform_6, window_bounds = array<i64: 32, 1>}, {pipeline_mode = #tpu.pipeline_mode<synchronous>, transform_indices = @transform_7, window_bounds = array<i64: 32, 1>}, {pipeline_mode = #tpu.pipeline_mode<synchronous>, transform_indices = @transform_8, window_bounds = array<i64: 1, 1>}, {transform_indices = @transform_9, window_bounds = array<i64: 1, 128>}]} {
    %c0 = arith.constant 0 : index
    %c0_0 = arith.constant 0 : index
    %0 = vector.load %arg1[%c0, %c0_0] : memref<2x128xf32, #tpu.memory_space<vmem>>, vector<2x128xf32>
    %c0_1 = arith.constant 0 : index
    %c0_2 = arith.constant 0 : index
    %1 = vector.load %arg3[%c0_1, %c0_2] : memref<32x1xf32, #tpu.memory_space<vmem>>, vector<32x1xf32>
    %c0_3 = arith.constant 0 : index
    %c0_4 = arith.constant 0 : index
    %2 = vector.load %arg5[%c0_3, %c0_4] : memref<32x1xf32, #tpu.memory_space<vmem>>, vector<32x1xf32>
    %c0_5 = arith.constant 0 : index
    %c0_6 = arith.constant 0 : index
    %3 = vector.load %arg7[%c0_5, %c0_6] : memref<32x1xf32, #tpu.memory_space<vmem>>, vector<32x1xf32>
    %c0_7 = arith.constant 0 : index
    %c0_8 = arith.constant 0 : index
    %4 = vector.load %arg9[%c0_7, %c0_8] : memref<1x1xf32, #tpu.memory_space<vmem>>, vector<1x1xf32>
    %c0_9 = arith.constant 0 : index
    %c0_10 = arith.constant 0 : index
    %5 = vector.load %arg2[%c0_9, %c0_10] : memref<32x2xf32, #tpu.memory_space<vmem>>, vector<32x2xf32>
    %6 = vector.extract_strided_slice %5 {offsets = [0, 0], sizes = [32, 1], strides = [1, 1]} : vector<32x2xf32> to vector<32x1xf32>
    %7 = vector.extract_strided_slice %0 {offsets = [0, 0], sizes = [1, 128], strides = [1, 1]} : vector<2x128xf32> to vector<1x128xf32>
    %8 = vector.broadcast %6 : vector<32x1xf32> to vector<32x128xf32>
    %9 = vector.broadcast %7 : vector<1x128xf32> to vector<32x128xf32>
    %10 = arith.mulf %8, %9 : vector<32x128xf32>
    %11 = vector.broadcast %1 : vector<32x1xf32> to vector<32x128xf32>
    %12 = arith.addf %11, %10 : vector<32x128xf32>
    %13 = vector.extract_strided_slice %5 {offsets = [0, 1], sizes = [32, 1], strides = [1, 1]} : vector<32x2xf32> to vector<32x1xf32>
    %14 = vector.extract_strided_slice %0 {offsets = [1, 0], sizes = [1, 128], strides = [1, 1]} : vector<2x128xf32> to vector<1x128xf32>
    %15 = vector.broadcast %13 : vector<32x1xf32> to vector<32x128xf32>
    %16 = vector.broadcast %14 : vector<1x128xf32> to vector<32x128xf32>
    %17 = arith.mulf %15, %16 : vector<32x128xf32>
    %18 = arith.addf %12, %17 : vector<32x128xf32>
    %19 = math.sin %18 : vector<32x128xf32>
    %c0_11 = arith.constant 0 : index
    %c0_12 = arith.constant 0 : index
    %20 = vector.load %arg4[%c0_11, %c0_12] : memref<32x32xf32, #tpu.memory_space<vmem>>, vector<32x32xf32>
    %cst = arith.constant dense<0.000000e+00> : vector<32x128xf32>
    %21 = tpu.matmul %20, %19, %cst {dimension_numbers = #tpu.dot_dimension_numbers<[1], [0], [0], [1], [0, 0, 1, 1], [], []>} : vector<32x32xf32>, vector<32x128xf32>, vector<32x128xf32> -> vector<32x128xf32>
    %22 = vector.broadcast %2 : vector<32x1xf32> to vector<32x128xf32>
    %23 = arith.addf %21, %22 : vector<32x128xf32>
    %24 = math.sin %23 : vector<32x128xf32>
    %c0_13 = arith.constant 0 : index
    %c0_14 = arith.constant 0 : index
    %25 = vector.load %arg6[%c0_13, %c0_14] : memref<32x32xf32, #tpu.memory_space<vmem>>, vector<32x32xf32>
    %cst_15 = arith.constant dense<0.000000e+00> : vector<32x128xf32>
    %26 = tpu.matmul %25, %24, %cst_15 {dimension_numbers = #tpu.dot_dimension_numbers<[1], [0], [0], [1], [0, 0, 1, 1], [], []>} : vector<32x32xf32>, vector<32x128xf32>, vector<32x128xf32> -> vector<32x128xf32>
    %27 = vector.broadcast %3 : vector<32x1xf32> to vector<32x128xf32>
    %28 = arith.addf %26, %27 : vector<32x128xf32>
    %29 = math.sin %28 : vector<32x128xf32>
    %c0_16 = arith.constant 0 : index
    %c0_17 = arith.constant 0 : index
    %30 = vector.load %arg8[%c0_16, %c0_17] : memref<32x1xf32, #tpu.memory_space<vmem>>, vector<32x1xf32>
    %31 = vector.broadcast %30 : vector<32x1xf32> to vector<32x128xf32>
    %32 = arith.mulf %29, %31 : vector<32x128xf32>
    %cst_18 = arith.constant dense<0.000000e+00> : vector<128xf32>
    %33 = vector.multi_reduction <add>, %32, %cst_18 [0] : vector<32x128xf32> to vector<128xf32>
    %34 = vector.shape_cast %33 : vector<128xf32> to vector<1x128xf32>
    %35 = vector.broadcast %4 : vector<1x1xf32> to vector<1x128xf32>
    %36 = arith.addf %34, %35 : vector<1x128xf32>
    %c0_19 = arith.constant 0 : index
    %c0_20 = arith.constant 0 : index
    %37 = vector.load %arg10[%c0_19, %c0_20] : memref<1x128xf32, #tpu.memory_space<vmem>>, vector<1x128xf32>
    tpu.vector_store %arg10[%c0_19, %c0_20], %36 {strides = array<i32>} : memref<1x128xf32, #tpu.memory_space<vmem>>, vector<1x128xf32>,
    return
  }
  func.func @transform_0(%arg0: i32) -> (i32, i32) {
    %c0_i32 = arith.constant 0 : i32
    %c0_i32_0 = arith.constant 0 : i32
    return %c0_i32, %arg0 : i32, i32
  }
  func.func @transform_1(%arg0: i32) -> (i32, i32) {
    %c0_i32 = arith.constant 0 : i32
    %c0_i32_0 = arith.constant 0 : i32
    %c0_i32_1 = arith.constant 0 : i32
    return %c0_i32, %c0_i32_0 : i32, i32
  }
  func.func @transform_2(%arg0: i32) -> (i32, i32) {
    %c0_i32 = arith.constant 0 : i32
    %c0_i32_0 = arith.constant 0 : i32
    %c0_i32_1 = arith.constant 0 : i32
    return %c0_i32, %c0_i32_0 : i32, i32
  }
  func.func @transform_3(%arg0: i32) -> (i32, i32) {
    %c0_i32 = arith.constant 0 : i32
    %c0_i32_0 = arith.constant 0 : i32
    %c0_i32_1 = arith.constant 0 : i32
    return %c0_i32, %c0_i32_0 : i32, i32
  }
  func.func @transform_4(%arg0: i32) -> (i32, i32) {
    %c0_i32 = arith.constant 0 : i32
    %c0_i32_0 = arith.constant 0 : i32
    %c0_i32_1 = arith.constant 0 : i32
    return %c0_i32, %c0_i32_0 : i32, i32
  }
  func.func @transform_5(%arg0: i32) -> (i32, i32) {
    %c0_i32 = arith.constant 0 : i32
    %c0_i32_0 = arith.constant 0 : i32
    %c0_i32_1 = arith.constant 0 : i32
    return %c0_i32, %c0_i32_0 : i32, i32
  }
  func.func @transform_6(%arg0: i32) -> (i32, i32) {
    %c0_i32 = arith.constant 0 : i32
    %c0_i32_0 = arith.constant 0 : i32
    %c0_i32_1 = arith.constant 0 : i32
    return %c0_i32, %c0_i32_0 : i32, i32
  }
  func.func @transform_7(%arg0: i32) -> (i32, i32) {
    %c0_i32 = arith.constant 0 : i32
    %c0_i32_0 = arith.constant 0 : i32
    %c0_i32_1 = arith.constant 0 : i32
    return %c0_i32, %c0_i32_0 : i32, i32
  }
  func.func @transform_8(%arg0: i32) -> (i32, i32) {
    %c0_i32 = arith.constant 0 : i32
    %c0_i32_0 = arith.constant 0 : i32
    %c0_i32_1 = arith.constant 0 : i32
    return %c0_i32, %c0_i32_0 : i32, i32
  }
  func.func @transform_9(%arg0: i32) -> (i32, i32) {
    %c0_i32 = arith.constant 0 : i32
    %c0_i32_0 = arith.constant 0 : i32
    return %c0_i32, %arg0 : i32, i32
  }
}

</mosaic_0001>

<llo_original>
// kernel: tpu_custom_call.1
$region0: #{tpu_custom_call.1}
  #allocation0 [shape = 'u32[]', space=smem, size = 0x4, offset = 0x4, fixed_abs, tag = 'smem constant byte address 0x4 - core index']
  #allocation1 [shape = 'u32[144,128]{1,0:T(1,128)}', space=vmem, size = 0x12000, scoped, tag = 'internal scratch']
  #allocation2 [shape = 'f32[1,1]{1,0:T(1,128)S(1)}', space=vmem, size = 0x200, scoped, tag = 'scoped memory for tpu_custom_call.1']
  %s0 = inlined_call_operand.vmem [shape: f32[2,128], index: 0, kind: input, shape index: {}]
  %s1 = inlined_call_operand.vmem [shape: f32[32,2], index: 1, kind: input, shape index: {}]
  %s2 = inlined_call_operand.vmem [shape: f32[32,1], index: 2, kind: input, shape index: {}]
  %s3 = inlined_call_operand.vmem [shape: f32[32,32], index: 3, kind: input, shape index: {}]
  %s4 = inlined_call_operand.vmem [shape: f32[32,1], index: 4, kind: input, shape index: {}]
  %s5 = inlined_call_operand.vmem [shape: f32[32,32], index: 5, kind: input, shape index: {}]
  %s6 = inlined_call_operand.vmem [shape: f32[32,1], index: 6, kind: input, shape index: {}]
  %s7 = inlined_call_operand.vmem [shape: f32[32,1], index: 7, kind: input, shape index: {}]
  %s8 = inlined_call_operand.<no memory space> [shape: f32[1,1], index: 8, kind: input, shape index: {}]
  %s9 = inlined_call_operand.hbm [shape: f32[1,128], index: 9, kind: output, shape index: {}]
  %s10 = sld [smem:[#allocation0]]
  $region46: #{tpu_custom_call.1} parent=0
    _
  %s12 = ssub.s32 1, %s10
  %s13 = scalar_select 0, %s12, %s10
  %v14 = vstv %s8
  %15 = vst [vmem:[#allocation2] sm:$0x1] %v14
  $region1: #{tpu_custom_call.1} parent=0
    #allocation3 [shape = 'u8[512]{0}', space=vmem, size = 0x400, scoped, tag = 'output window, operand 0, single buffered']
    #allocation4 [shape = 's32[1]{0}', space=sflag, size = 0x4, scoped, tag = 'scoped memory for tpu_custom_call.1']
    %16 = vsyncpa [#allocation4], 0
    // Predicated region
    $region2: #{tpu_custom_call.1} parent=1 // pred_check
      _
    $region3: #{tpu_custom_call.1} parent=1 // pred_check_branch
      %18 = sbr.rel (0) target = $region5
    $region4: #{tpu_custom_call.1} parent=1 // pred_region
      _
    $region5: #{tpu_custom_call.1} parent=1 // pred_fallthru
      _
    // Predicated region
    $region6: #{tpu_custom_call.1} parent=1 // pred_check
      _
    $region7: #{tpu_custom_call.1} parent=1 // pred_check_branch
      %20 = sbr.rel (0) target = $region9
    $region8: #{tpu_custom_call.1} parent=1 // pred_region
      _
    $region9: #{tpu_custom_call.1} parent=1 // pred_fallthru
      _
    // Predicated region
    $region10: #{tpu_custom_call.1} parent=1 // pred_check
      _
    $region11: #{tpu_custom_call.1} parent=1 // pred_check_branch
      %22 = sbr.rel (0) target = $region13
    $region12: #{tpu_custom_call.1} parent=1 // pred_region
      _
    $region13: #{tpu_custom_call.1} parent=1 // pred_fallthru
      _
    // Predicated region
    $region14: #{tpu_custom_call.1} parent=1 // pred_check
      _
    $region15: #{tpu_custom_call.1} parent=1 // pred_check_branch
      %24 = sbr.rel (0) target = $region17
    $region16: #{tpu_custom_call.1} parent=1 // pred_region
      _
    $region17: #{tpu_custom_call.1} parent=1 // pred_fallthru
      _
    // Predicated region
    $region18: #{tpu_custom_call.1} parent=1 // pred_check
      _
    $region19: #{tpu_custom_call.1} parent=1 // pred_check_branch
      %26 = sbr.rel (0) target = $region21
    $region20: #{tpu_custom_call.1} parent=1 // pred_region
      _
    $region21: #{tpu_custom_call.1} parent=1 // pred_fallthru
      _
    // Predicated region
    $region22: #{tpu_custom_call.1} parent=1 // pred_check
      _
    $region23: #{tpu_custom_call.1} parent=1 // pred_check_branch
      %28 = sbr.rel (0) target = $region25
    $region24: #{tpu_custom_call.1} parent=1 // pred_region
      _
    $region25: #{tpu_custom_call.1} parent=1 // pred_fallthru
      _
    // Predicated region
    $region26: #{tpu_custom_call.1} parent=1 // pred_check
      _
    $region27: #{tpu_custom_call.1} parent=1 // pred_check_branch
      %30 = sbr.rel (0) target = $region29
    $region28: #{tpu_custom_call.1} parent=1 // pred_region
      _
    $region29: #{tpu_custom_call.1} parent=1 // pred_fallthru
      _
    // Predicated region
    $region30: #{tpu_custom_call.1} parent=1 // pred_check
      _
    $region31: #{tpu_custom_call.1} parent=1 // pred_check_branch
      %32 = sbr.rel (0) target = $region33
    $region32: #{tpu_custom_call.1} parent=1 // pred_region
      _
    $region33: #{tpu_custom_call.1} parent=1 // pred_fallthru
      _
    // Predicated region
    $region34: #{tpu_custom_call.1} parent=1 // pred_check
      _
    $region35: #{tpu_custom_call.1} parent=1 // pred_check_branch
      %34 = sbr.rel (0) target = $region37
    $region36: #{tpu_custom_call.1} parent=1 // pred_region
      _
    $region37: #{tpu_custom_call.1} parent=1 // pred_fallthru
      _
    %v35 = vld [vmem:[%s0] sm:$0x3]
    %v36 = vld [vmem:[%s2] sm:$0xff]
    %v37 = vld [vmem:[%s2 + $0x8] sm:$0xff]
    %v38 = vld [vmem:[%s2 + $0x10] sm:$0xff]
    %v39 = vld [vmem:[%s2 + $0x18] sm:$0xff]
    %v40 = vld [vmem:[%s4] sm:$0xff]
    %v41 = vld [vmem:[%s4 + $0x8] sm:$0xff]
    %v42 = vld [vmem:[%s4 + $0x10] sm:$0xff]
    %v43 = vld [vmem:[%s4 + $0x18] sm:$0xff]
    %v44 = vld [vmem:[%s6] sm:$0xff]
    %v45 = vld [vmem:[%s6 + $0x8] sm:$0xff]
    %v46 = vld [vmem:[%s6 + $0x10] sm:$0xff]
    %v47 = vld [vmem:[%s6 + $0x18] sm:$0xff]
    %v48 = vld [vmem:[#allocation2] sm:$0x1]
    %v49 = vld [vmem:[%s1] sm:$0xff]
    %v50 = vld [vmem:[%s1 + $0x8] sm:$0xff]
    %v51 = vld [vmem:[%s1 + $0x10] sm:$0xff]
    %v52 = vld [vmem:[%s1 + $0x18] sm:$0xff]
    %54 = vset.pattern.permute.xlu0 0
    %55 = vperm.xlu0 %54, %v49
    %v56 = vpop.permute.xlu0 %55
    %59 = vset.pattern.permute.xlu0 0
    %60 = vperm.xlu0 %59, %v50
    %v61 = vpop.permute.xlu0 %60
    %64 = vset.pattern.permute.xlu0 0
    %65 = vperm.xlu0 %64, %v51
    %v66 = vpop.permute.xlu0 %65
    %69 = vset.pattern.permute.xlu0 0
    %70 = vperm.xlu0 %69, %v52
    %v71 = vpop.permute.xlu0 %70
    %v73 = vlaneseq
    %v74 = vshrl.u32 %v73, 7
    %v75 = vsub.s32 0, %v74
    %v76 = vrot.slane %v35, %v75
    %v77 = vmul.f32 %v56, %v76
    %v78 = vmul.f32 %v61, %v76
    %v79 = vmul.f32 %v66, %v76
    %v80 = vmul.f32 %v71, %v76
    %82 = vset.pattern.permute.xlu0 0
    %83 = vperm.xlu0 %82, %v36
    %v84 = vpop.permute.xlu0 %83
    %87 = vset.pattern.permute.xlu0 0
    %88 = vperm.xlu0 %87, %v37
    %v89 = vpop.permute.xlu0 %88
    %92 = vset.pattern.permute.xlu0 0
    %93 = vperm.xlu0 %92, %v38
    %v94 = vpop.permute.xlu0 %93
    %97 = vset.pattern.permute.xlu0 0
    %98 = vperm.xlu0 %97, %v39
    %v99 = vpop.permute.xlu0 %98
    %v101 = vadd.f32 %v84, %v77
    %v102 = vadd.f32 %v89, %v78
    %v103 = vadd.f32 %v94, %v79
    %v104 = vadd.f32 %v99, %v80
    %105 = vset.pattern.permute.xlu0 1
    %106 = vperm.xlu0 %105, %v49
    %v107 = vpop.permute.xlu0 %106
    %109 = vset.pattern.permute.xlu0 1
    %110 = vperm.xlu0 %109, %v50
    %v111 = vpop.permute.xlu0 %110
    %113 = vset.pattern.permute.xlu0 1
    %114 = vperm.xlu0 %113, %v51
    %v115 = vpop.permute.xlu0 %114
    %117 = vset.pattern.permute.xlu0 1
    %118 = vperm.xlu0 %117, %v52
    %v119 = vpop.permute.xlu0 %118
    %v121 = vlaneseq
    %v122 = vshrl.u32 %v121, 7
    %v123 = vsub.s32 1, %v122
    %v124 = vrot.slane %v35, %v123
    %v125 = vmul.f32 %v107, %v124
    %v126 = vmul.f32 %v111, %v124
    %v127 = vmul.f32 %v115, %v124
    %v128 = vmul.f32 %v119, %v124
    %v129 = vadd.f32 %v101, %v125
    %v130 = vadd.f32 %v102, %v126
    %v131 = vadd.f32 %v103, %v127
    %v132 = vadd.f32 %v104, %v128
    %v133 = vand.u32 2147483647, %v129
    %vm134 = vcmp.le.f32.partialorder %v133, 0.7853982
    %vm135 = vcmp.lt.s32.totalorder %v129, 0
    %v136 = vand.u32 %v129, 2139095040
    %v137 = vshrl.u32 %v136, 23
    %v138 = vsub.s32 %v137, 127
    %v139 = vand.u32 2147483647, %v129
    %v140 = vand.u32 %v139, 8388607
    %v141 = vor.u32 %v140, 8388608
    %v142 = vsub.s32 0, %v141
    %v143 = vadd.s32 %v138, 1
    %vm144 = vcmp.gt.s32.totalorder %v143, 0
    %v145 = vsel %vm144, %v143, 0
    %v146 = vshrl.u32 %v145, 5
    %v147 = vand.u32 %v145, 31
    %v148 = vsub.s32 32, %v147
    %v149 = vshrl.u32 683565275, %v148
    %v150 = vshll.u32 683565275, %v147
    %v151 = vshrl.u32 2475754826, %v148
    %v152 = vor.u32 %v150, %v151
    %v153 = vshll.u32 2475754826, %v147
    %v154 = vshrl.u32 2131351028, %v148
    %v155 = vor.u32 %v153, %v154
    %v156 = vshll.u32 2131351028, %v147
    %v157 = vshrl.u32 2102212464, %v148
    %v158 = vor.u32 %v156, %v157
    %v159 = vshll.u32 2102212464, %v147
    %v160 = vshrl.u32 920167782, %v148
    %v161 = vor.u32 %v159, %v160
    %v162 = vshll.u32 920167782, %v147
    %v163 = vshrl.u32 1326507024, %v148
    %v164 = vor.u32 %v162, %v163
    %vm165 = vcmp.lt.s32.totalorder %v146, 1
    %vm166 = vcmp.lt.s32.totalorder %v146, 2
    %vm167 = vcmp.lt.s32.totalorder %v146, 3
    %vm168 = vcmp.lt.s32.totalorder %v146, 4
    %v169 = vsel %vm165, %v149, %v152
    %v170 = vsel %vm168, %v158, 2102212464
    %v171 = vsel %vm167, %v155, %v170
    %v172 = vsel %vm166, %v169, %v171
    %v173 = vsel %vm165, %v152, %v155
    %v174 = vsel %vm168, %v161, 920167782
    %v175 = vsel %vm167, %v158, %v174
    %v176 = vsel %vm166, %v173, %v175
    %v177 = vsel %vm165, %v155, %v158
    %v178 = vsel %vm168, %v164, 1326507024
    %v179 = vsel %vm167, %v161, %v178
    %v180 = vsel %vm166, %v177, %v179
    %v181 = vshll.u32 %v141, 8
    %v182 = vmul.u32.u64.compose %v181, %v180
    %v183 = vextract.low.u32 %v182
    %v184 = vextract.high.u32 %v182
    %v185 = vmul.u32.u64.compose %v181, %v176
    %v186 = vextract.low.u32 %v185
    %v187 = vextract.high.u32 %v185
    %v188 = vmul.u32 %v181, %v172
    %v189 = vadd.s32 %v184, %v186
    %vm190 = vc.u32 %v184, %v186
    %v191 = vadd.s32 %v187, 1
    %v192 = vsel %vm190, %v191, %v187
    %v193 = vadd.s32 %v188, %v192
    %v194 = vadd.s32 %v193, 536870912
    %v195 = vshrl.u32 %v194, 30
    %v196 = vshll.u32 %v195, 30
    %v197 = vsub.s32 %v193, %v196
    %vm198 = vcmp.lt.s32.totalorder %v197, 0
    %v199 = vsub.s32 0, %v197
    %v200 = vsel %vm198, %v199, %v197
    %v201 = vclz %v200
    %v202 = vsub.s32 %v201, 2
    %vm203 = vcmp.gt.s32.totalorder 0, %v202
    %v204 = vsel %vm203, 0, %v202
    %v205 = vsub.s32 32, %v204
    %v206 = vshll.u32 %v197, %v204
    %v207 = vshrl.u32 %v189, %v205
    %v208 = vor.u32 %v206, %v207
    %v209 = vsub.s32 4294967266, %v204
    %v210 = vadd.s32 %v209, 127
    %v211 = vshll.u32 %v210, 23
    %v212 = vor.u32 4788187, %v211
    %v213 = vand.u32 2147483647, %v212
    %v215 = vcvt.s32.f32 %v208
    %v216 = vmul.f32 %v215, %v213
    %v217 = vxor.u32 %v216, 2147483648
    %v218 = vsel %vm135, %v217, %v216
    %v219 = vsub.s32 4, %v195
    %v220 = vsel %vm135, %v219, %v195
    %v221 = vsel %vm134, %v129, %v218
    %v222 = vsel %vm134, 0, %v220
    %v223 = vcosq.f32.pop %v221
    %v224 = vsinq.f32.pop %v221
    %vm225 = vweird.f32 %v129
    %v226 = vadd.s32 %v222, 3
    %v227 = vand.u32 %v226, 3
    %vm228 = vcmp.lt.s32.totalorder %v227, 2
    %vm229 = vcmp.eq.s32.totalorder %v227, 0
    %v230 = vxor.u32 %v224, 2147483648
    %v231 = vsel %vm229, %v223, %v230
    %vm232 = vcmp.eq.s32.totalorder %v227, 2
    %v233 = vxor.u32 %v223, 2147483648
    %v234 = vsel %vm232, %v233, %v224
    %v235 = vsel %vm228, %v231, %v234
    %v236 = vsel %vm225, nan, %v235
    %v237 = vand.u32 2147483647, %v130
    %vm238 = vcmp.le.f32.partialorder %v237, 0.7853982
    %vm239 = vcmp.lt.s32.totalorder %v130, 0
    %v240 = vand.u32 %v130, 2139095040
    %v241 = vshrl.u32 %v240, 23
    %v242 = vsub.s32 %v241, 127
    %v243 = vand.u32 2147483647, %v130
    %v244 = vand.u32 %v243, 8388607
    %v245 = vor.u32 %v244, 8388608
    %v246 = vsub.s32 0, %v245
    %v247 = vadd.s32 %v242, 1
    %vm248 = vcmp.gt.s32.totalorder %v247, 0
    %v249 = vsel %vm248, %v247, 0
    %v250 = vshrl.u32 %v249, 5
    %v251 = vand.u32 %v249, 31
    %v252 = vsub.s32 32, %v251
    %v253 = vshrl.u32 683565275, %v252
    %v254 = vshll.u32 683565275, %v251
    %v255 = vshrl.u32 2475754826, %v252
    %v256 = vor.u32 %v254, %v255
    %v257 = vshll.u32 2475754826, %v251
    %v258 = vshrl.u32 2131351028, %v252
    %v259 = vor.u32 %v257, %v258
    %v260 = vshll.u32 2131351028, %v251
    %v261 = vshrl.u32 2102212464, %v252
    %v262 = vor.u32 %v260, %v261
    %v263 = vshll.u32 2102212464, %v251
    %v264 = vshrl.u32 920167782, %v252
    %v265 = vor.u32 %v263, %v264
    %v266 = vshll.u32 920167782, %v251
    %v267 = vshrl.u32 1326507024, %v252
    %v268 = vor.u32 %v266, %v267
    %vm269 = vcmp.lt.s32.totalorder %v250, 1
    %vm270 = vcmp.lt.s32.totalorder %v250, 2
    %vm271 = vcmp.lt.s32.totalorder %v250, 3
    %vm272 = vcmp.lt.s32.totalorder %v250, 4
    %v273 = vsel %vm269, %v253, %v256
    %v274 = vsel %vm272, %v262, 2102212464
    %v275 = vsel %vm271, %v259, %v274
    %v276 = vsel %vm270, %v273, %v275
    %v277 = vsel %vm269, %v256, %v259
    %v278 = vsel %vm272, %v265, 920167782
    %v279 = vsel %vm271, %v262, %v278
    %v280 = vsel %vm270, %v277, %v279
    %v281 = vsel %vm269, %v259, %v262
    %v282 = vsel %vm272, %v268, 1326507024
    %v283 = vsel %vm271, %v265, %v282
    %v284 = vsel %vm270, %v281, %v283
    %v285 = vshll.u32 %v245, 8
    %v286 = vmul.u32.u64.compose %v285, %v284
    %v287 = vextract.low.u32 %v286
    %v288 = vextract.high.u32 %v286
    %v289 = vmul.u32.u64.compose %v285, %v280
    %v290 = vextract.low.u32 %v289
    %v291 = vextract.high.u32 %v289
    %v292 = vmul.u32 %v285, %v276
    %v293 = vadd.s32 %v288, %v290
    %vm294 = vc.u32 %v288, %v290
    %v295 = vadd.s32 %v291, 1
    %v296 = vsel %vm294, %v295, %v291
    %v297 = vadd.s32 %v292, %v296
    %v298 = vadd.s32 %v297, 536870912
    %v299 = vshrl.u32 %v298, 30
    %v300 = vshll.u32 %v299, 30
    %v301 = vsub.s32 %v297, %v300
    %vm302 = vcmp.lt.s32.totalorder %v301, 0
    %v303 = vsub.s32 0, %v301
    %v304 = vsel %vm302, %v303, %v301
    %v305 = vclz %v304
    %v306 = vsub.s32 %v305, 2
    %vm307 = vcmp.gt.s32.totalorder 0, %v306
    %v308 = vsel %vm307, 0, %v306
    %v309 = vsub.s32 32, %v308
    %v310 = vshll.u32 %v301, %v308
    %v311 = vshrl.u32 %v293, %v309
    %v312 = vor.u32 %v310, %v311
    %v313 = vsub.s32 4294967266, %v308
    %v314 = vadd.s32 %v313, 127
    %v315 = vshll.u32 %v314, 23
    %v316 = vor.u32 4788187, %v315
    %v317 = vand.u32 2147483647, %v316
    %v319 = vcvt.s32.f32 %v312
    %v320 = vmul.f32 %v319, %v317
    %v321 = vxor.u32 %v320, 2147483648
    %v322 = vsel %vm239, %v321, %v320
    %v323 = vsub.s32 4, %v299
    %v324 = vsel %vm239, %v323, %v299
    %v325 = vsel %vm238, %v130, %v322
    %v326 = vsel %vm238, 0, %v324
    %v327 = vcosq.f32.pop %v325
    %v328 = vsinq.f32.pop %v325
    %vm329 = vweird.f32 %v130
    %v330 = vadd.s32 %v326, 3
    %v331 = vand.u32 %v330, 3
    %vm332 = vcmp.lt.s32.totalorder %v331, 2
    %vm333 = vcmp.eq.s32.totalorder %v331, 0
    %v334 = vxor.u32 %v328, 2147483648
    %v335 = vsel %vm333, %v327, %v334
    %vm336 = vcmp.eq.s32.totalorder %v331, 2
    %v337 = vxor.u32 %v327, 2147483648
    %v338 = vsel %vm336, %v337, %v328
    %v339 = vsel %vm332, %v335, %v338
    %v340 = vsel %vm329, nan, %v339
    %v341 = vand.u32 2147483647, %v131
    %vm342 = vcmp.le.f32.partialorder %v341, 0.7853982
    %vm343 = vcmp.lt.s32.totalorder %v131, 0
    %v344 = vand.u32 %v131, 2139095040
    %v345 = vshrl.u32 %v344, 23
    %v346 = vsub.s32 %v345, 127
    %v347 = vand.u32 2147483647, %v131
    %v348 = vand.u32 %v347, 8388607
    %v349 = vor.u32 %v348, 8388608
    %v350 = vsub.s32 0, %v349
    %v351 = vadd.s32 %v346, 1
    %vm352 = vcmp.gt.s32.totalorder %v351, 0
    %v353 = vsel %vm352, %v351, 0
    %v354 = vshrl.u32 %v353, 5
    %v355 = vand.u32 %v353, 31
    %v356 = vsub.s32 32, %v355
    %v357 = vshrl.u32 683565275, %v356
    %v358 = vshll.u32 683565275, %v355
    %v359 = vshrl.u32 2475754826, %v356
    %v360 = vor.u32 %v358, %v359
    %v361 = vshll.u32 2475754826, %v355
    %v362 = vshrl.u32 2131351028, %v356
    %v363 = vor.u32 %v361, %v362
    %v364 = vshll.u32 2131351028, %v355
    %v365 = vshrl.u32 2102212464, %v356
    %v366 = vor.u32 %v364, %v365
    %v367 = vshll.u32 2102212464, %v355
    %v368 = vshrl.u32 920167782, %v356
    %v369 = vor.u32 %v367, %v368
    %v370 = vshll.u32 920167782, %v355
    %v371 = vshrl.u32 1326507024, %v356
    %v372 = vor.u32 %v370, %v371
    %vm373 = vcmp.lt.s32.totalorder %v354, 1
    %vm374 = vcmp.lt.s32.totalorder %v354, 2
    %vm375 = vcmp.lt.s32.totalorder %v354, 3
    %vm376 = vcmp.lt.s32.totalorder %v354, 4
    %v377 = vsel %vm373, %v357, %v360
    %v378 = vsel %vm376, %v366, 2102212464
    %v379 = vsel %vm375, %v363, %v378
    %v380 = vsel %vm374, %v377, %v379
    %v381 = vsel %vm373, %v360, %v363
    %v382 = vsel %vm376, %v369, 920167782
    %v383 = vsel %vm375, %v366, %v382
    %v384 = vsel %vm374, %v381, %v383
    %v385 = vsel %vm373, %v363, %v366
    %v386 = vsel %vm376, %v372, 1326507024
    %v387 = vsel %vm375, %v369, %v386
    %v388 = vsel %vm374, %v385, %v387
    %v389 = vshll.u32 %v349, 8
    %v390 = vmul.u32.u64.compose %v389, %v388
    %v391 = vextract.low.u32 %v390
    %v392 = vextract.high.u32 %v390
    %v393 = vmul.u32.u64.compose %v389, %v384
    %v394 = vextract.low.u32 %v393
    %v395 = vextract.high.u32 %v393
    %v396 = vmul.u32 %v389, %v380
    %v397 = vadd.s32 %v392, %v394
    %vm398 = vc.u32 %v392, %v394
    %v399 = vadd.s32 %v395, 1
    %v400 = vsel %vm398, %v399, %v395
    %v401 = vadd.s32 %v396, %v400
    %v402 = vadd.s32 %v401, 536870912
    %v403 = vshrl.u32 %v402, 30
    %v404 = vshll.u32 %v403, 30
    %v405 = vsub.s32 %v401, %v404
    %vm406 = vcmp.lt.s32.totalorder %v405, 0
    %v407 = vsub.s32 0, %v405
    %v408 = vsel %vm406, %v407, %v405
    %v409 = vclz %v408
    %v410 = vsub.s32 %v409, 2
    %vm411 = vcmp.gt.s32.totalorder 0, %v410
    %v412 = vsel %vm411, 0, %v410
    %v413 = vsub.s32 32, %v412
    %v414 = vshll.u32 %v405, %v412
    %v415 = vshrl.u32 %v397, %v413
    %v416 = vor.u32 %v414, %v415
    %v417 = vsub.s32 4294967266, %v412
    %v418 = vadd.s32 %v417, 127
    %v419 = vshll.u32 %v418, 23
    %v420 = vor.u32 4788187, %v419
    %v421 = vand.u32 2147483647, %v420
    %v423 = vcvt.s32.f32 %v416
    %v424 = vmul.f32 %v423, %v421
    %v425 = vxor.u32 %v424, 2147483648
    %v426 = vsel %vm343, %v425, %v424
    %v427 = vsub.s32 4, %v403
    %v428 = vsel %vm343, %v427, %v403
    %v429 = vsel %vm342, %v131, %v426
    %v430 = vsel %vm342, 0, %v428
    %v431 = vcosq.f32.pop %v429
    %v432 = vsinq.f32.pop %v429
    %vm433 = vweird.f32 %v131
    %v434 = vadd.s32 %v430, 3
    %v435 = vand.u32 %v434, 3
    %vm436 = vcmp.lt.s32.totalorder %v435, 2
    %vm437 = vcmp.eq.s32.totalorder %v435, 0
    %v438 = vxor.u32 %v432, 2147483648
    %v439 = vsel %vm437, %v431, %v438
    %vm440 = vcmp.eq.s32.totalorder %v435, 2
    %v441 = vxor.u32 %v431, 2147483648
    %v442 = vsel %vm440, %v441, %v432
    %v443 = vsel %vm436, %v439, %v442
    %v444 = vsel %vm433, nan, %v443
    %v445 = vand.u32 2147483647, %v132
    %vm446 = vcmp.le.f32.partialorder %v445, 0.7853982
    %vm447 = vcmp.lt.s32.totalorder %v132, 0
    %v448 = vand.u32 %v132, 2139095040
    %v449 = vshrl.u32 %v448, 23
    %v450 = vsub.s32 %v449, 127
    %v451 = vand.u32 2147483647, %v132
    %v452 = vand.u32 %v451, 8388607
    %v453 = vor.u32 %v452, 8388608
    %v454 = vsub.s32 0, %v453
    %v455 = vadd.s32 %v450, 1
    %vm456 = vcmp.gt.s32.totalorder %v455, 0
    %v457 = vsel %vm456, %v455, 0
    %v458 = vshrl.u32 %v457, 5
    %v459 = vand.u32 %v457, 31
    %v460 = vsub.s32 32, %v459
    %v461 = vshrl.u32 683565275, %v460
    %v462 = vshll.u32 683565275, %v459
    %v463 = vshrl.u32 2475754826, %v460
    %v464 = vor.u32 %v462, %v463
    %v465 = vshll.u32 2475754826, %v459
    %v466 = vshrl.u32 2131351028, %v460
    %v467 = vor.u32 %v465, %v466
    %v468 = vshll.u32 2131351028, %v459
    %v469 = vshrl.u32 2102212464, %v460
    %v470 = vor.u32 %v468, %v469
    %v471 = vshll.u32 2102212464, %v459
    %v472 = vshrl.u32 920167782, %v460
    %v473 = vor.u32 %v471, %v472
    %v474 = vshll.u32 920167782, %v459
    %v475 = vshrl.u32 1326507024, %v460
    %v476 = vor.u32 %v474, %v475
    %vm477 = vcmp.lt.s32.totalorder %v458, 1
    %vm478 = vcmp.lt.s32.totalorder %v458, 2
    %vm479 = vcmp.lt.s32.totalorder %v458, 3
    %vm480 = vcmp.lt.s32.totalorder %v458, 4
    %v481 = vsel %vm477, %v461, %v464
    %v482 = vsel %vm480, %v470, 2102212464
    %v483 = vsel %vm479, %v467, %v482
    %v484 = vsel %vm478, %v481, %v483
    %v485 = vsel %vm477, %v464, %v467
    %v486 = vsel %vm480, %v473, 920167782
    %v487 = vsel %vm479, %v470, %v486
    %v488 = vsel %vm478, %v485, %v487
    %v489 = vsel %vm477, %v467, %v470
    %v490 = vsel %vm480, %v476, 1326507024
    %v491 = vsel %vm479, %v473, %v490
    %v492 = vsel %vm478, %v489, %v491
    %v493 = vshll.u32 %v453, 8
    %v494 = vmul.u32.u64.compose %v493, %v492
    %v495 = vextract.low.u32 %v494
    %v496 = vextract.high.u32 %v494
    %v497 = vmul.u32.u64.compose %v493, %v488
    %v498 = vextract.low.u32 %v497
    %v499 = vextract.high.u32 %v497
    %v500 = vmul.u32 %v493, %v484
    %v501 = vadd.s32 %v496, %v498
    %vm502 = vc.u32 %v496, %v498
    %v503 = vadd.s32 %v499, 1
    %v504 = vsel %vm502, %v503, %v499
    %v505 = vadd.s32 %v500, %v504
    %v506 = vadd.s32 %v505, 536870912
    %v507 = vshrl.u32 %v506, 30
    %v508 = vshll.u32 %v507, 30
    %v509 = vsub.s32 %v505, %v508
    %vm510 = vcmp.lt.s32.totalorder %v509, 0
    %v511 = vsub.s32 0, %v509
    %v512 = vsel %vm510, %v511, %v509
    %v513 = vclz %v512
    %v514 = vsub.s32 %v513, 2
    %vm515 = vcmp.gt.s32.totalorder 0, %v514
    %v516 = vsel %vm515, 0, %v514
    %v517 = vsub.s32 32, %v516
    %v518 = vshll.u32 %v509, %v516
    %v519 = vshrl.u32 %v501, %v517
    %v520 = vor.u32 %v518, %v519
    %v521 = vsub.s32 4294967266, %v516
    %v522 = vadd.s32 %v521, 127
    %v523 = vshll.u32 %v522, 23
    %v524 = vor.u32 4788187, %v523
    %v525 = vand.u32 2147483647, %v524
    %v527 = vcvt.s32.f32 %v520
    %v528 = vmul.f32 %v527, %v525
    %v529 = vxor.u32 %v528, 2147483648
    %v530 = vsel %vm447, %v529, %v528
    %v531 = vsub.s32 4, %v507
    %v532 = vsel %vm447, %v531, %v507
    %v533 = vsel %vm446, %v132, %v530
    %v534 = vsel %vm446, 0, %v532
    %v535 = vcosq.f32.pop %v533
    %v536 = vsinq.f32.pop %v533
    %vm537 = vweird.f32 %v132
    %v538 = vadd.s32 %v534, 3
    %v539 = vand.u32 %v538, 3
    %vm540 = vcmp.lt.s32.totalorder %v539, 2
    %vm541 = vcmp.eq.s32.totalorder %v539, 0
    %v542 = vxor.u32 %v536, 2147483648
    %v543 = vsel %vm541, %v535, %v542
    %vm544 = vcmp.eq.s32.totalorder %v539, 2
    %v545 = vxor.u32 %v535, 2147483648
    %v546 = vsel %vm544, %v545, %v536
    %v547 = vsel %vm540, %v543, %v546
    %v548 = vsel %vm537, nan, %v547
    %v549 = vld [vmem:[%s3] sm:$0xff]
    %v550 = vld [vmem:[%s3 + $0x8] sm:$0xff]
    %v551 = vld [vmem:[%s3 + $0x10] sm:$0xff]
    %v552 = vld [vmem:[%s3 + $0x18] sm:$0xff]
    %554 = vset.pattern.permute.xlu0 0
    %555 = vperm.xlu0 %554, %v40
    %v556 = vpop.permute.xlu0 %555
    %559 = vset.pattern.permute.xlu0 0
    %560 = vperm.xlu0 %559, %v41
    %v561 = vpop.permute.xlu0 %560
    %564 = vset.pattern.permute.xlu0 0
    %565 = vperm.xlu0 %564, %v42
    %v566 = vpop.permute.xlu0 %565
    %569 = vset.pattern.permute.xlu0 0
    %570 = vperm.xlu0 %569, %v43
    %v571 = vpop.permute.xlu0 %570
    %vm573 = vcmask 261120
    %v575 = vsel %vm573, %v549, 0
    %v578 = vsel %vm573, %v550, 0
    %v581 = vsel %vm573, %v551, 0
    %v584 = vsel %vm573, %v552, 0
    %586 = vmatprep.subr.mxu0 0.0
    %587 = vmatpush1.msra.mxu0 %v236
    %588 = vmatprep.subr.mxu0 0.0
    %589 = vmatpush1.msra.mxu0 %v340
    %590 = vmatprep.subr.mxu0 0.0
    %591 = vmatpush1.msra.mxu0 %v444
    %592 = vmatprep.subr.mxu0 0.0
    %593 = vmatpush1.msra.mxu0 %v548
    %594 = vmatprep.subr.mxu0 0.0
    %595 = vmatpush1.msra.mxu0 0.0
    %596 = vmatprep.subr.mxu0 0.0
    %597 = vmatpush1.msra.mxu0 0.0
    %598 = vmatprep.subr.mxu0 0.0
    %599 = vmatpush1.msra.mxu0 0.0
    %600 = vmatprep.subr.mxu0 0.0
    %601 = vmatpush1.msra.mxu0 0.0
    %602 = vmatprep.subr.mxu0 0.0
    %603 = vmatpush1.msra.mxu0 0.0
    %604 = vmatprep.subr.mxu0 0.0
    %605 = vmatpush1.msra.mxu0 0.0
    %606 = vmatprep.subr.mxu0 0.0
    %607 = vmatpush1.msra.mxu0 0.0
    %608 = vmatprep.subr.mxu0 0.0
    %609 = vmatpush1.msra.mxu0 0.0
    %610 = vmatprep.subr.mxu0 0.0
    %611 = vmatpush1.msra.mxu0 0.0
    %612 = vmatprep.subr.mxu0 0.0
    %613 = vmatpush1.msra.mxu0 0.0
    %614 = vmatprep.subr.mxu0 0.0
    %615 = vmatpush1.msra.mxu0 0.0
    %616 = vmatprep.subr.mxu0 0.0
    %617 = vmatpush1.msra.mxu0 0.0
    %618 = vmatprep.subr.mxu0 0.0
    %619 = vmatpush1.msra.mxu0 0.0
    %620 = vmatprep.subr.mxu0 0.0
    %621 = vmatpush1.msra.mxu0 0.0
    %622 = vmatprep.subr.mxu0 0.0
    %623 = vmatpush1.msra.mxu0 0.0
    %624 = vmatprep.subr.mxu0 0.0
    %625 = vmatpush1.msra.mxu0 0.0
    %626 = vmatprep.subr.mxu0 0.0
    %627 = vmatpush1.msra.mxu0 0.0
    %628 = vmatprep.subr.mxu0 0.0
    %629 = vmatpush1.msra.mxu0 0.0
    %630 = vmatprep.subr.mxu0 0.0
    %631 = vmatpush1.msra.mxu0 0.0
    %632 = vmatprep.subr.mxu0 0.0
    %633 = vmatpush1.msra.mxu0 0.0
    %634 = vmatprep.subr.mxu0 0.0
    %635 = vmatpush1.msra.mxu0 0.0
    %636 = vmatprep.subr.mxu0 0.0
    %637 = vmatpush1.msra.mxu0 0.0
    %638 = vmatprep.subr.mxu0 0.0
    %639 = vmatpush1.msra.mxu0 0.0
    %640 = vmatprep.subr.mxu0 0.0
    %641 = vmatpush1.msra.mxu0 0.0
    %642 = vmatprep.subr.mxu0 0.0
    %643 = vmatpush1.msra.mxu0 0.0
    %644 = vmatprep.subr.mxu0 0.0
    %645 = vmatpush1.msra.mxu0 0.0
    %646 = vmatprep.subr.mxu0 0.0
    %647 = vmatpush1.msra.mxu0 0.0
    %648 = vmatprep.subr.mxu0 0.0
    %649 = vmatpush1.msra.mxu0 0.0
    %650 = vmatprep.mubr.f32.mxu0 0.0
    %651 = vmatmul.mubr.f32.gmra.mrb[0].mxu0 %v575
    %v652 = vpop.f32.mrb[0].mxu0
    %v653 = vadd.f32 %v556, %v652
    %v654 = vpop.f32.mrb[0].mxu0
    %655 = vmatprep.mubr.f32.mxu0 0.0
    %656 = vmatmul.mubr.f32.gmra.mrb[0].mxu0 %v578
    %v657 = vpop.f32.mrb[0].mxu0
    %v658 = vadd.f32 %v561, %v657
    %v659 = vpop.f32.mrb[0].mxu0
    %660 = vmatprep.mubr.f32.mxu0 0.0
    %661 = vmatmul.mubr.f32.gmra.mrb[0].mxu0 %v581
    %v662 = vpop.f32.mrb[0].mxu0
    %v663 = vadd.f32 %v566, %v662
    %v664 = vpop.f32.mrb[0].mxu0
    %665 = vmatprep.mubr.f32.mxu0 0.0
    %666 = vmatmul.mubr.f32.gmra.mrb[0].mxu0 %v584
    %v667 = vpop.f32.mrb[0].mxu0
    %v668 = vadd.f32 %v571, %v667
    %v669 = vpop.f32.mrb[0].mxu0
    %670 = vdwg.mxu0
    %v671 = vand.u32 2147483647, %v653
    %vm672 = vcmp.le.f32.partialorder %v671, 0.7853982
    %vm673 = vcmp.lt.s32.totalorder %v653, 0
    %v674 = vand.u32 %v653, 2139095040
    %v675 = vshrl.u32 %v674, 23
    %v676 = vsub.s32 %v675, 127
    %v677 = vand.u32 2147483647, %v653
    %v678 = vand.u32 %v677, 8388607
    %v679 = vor.u32 %v678, 8388608
    %v680 = vsub.s32 0, %v679
    %v681 = vadd.s32 %v676, 1
    %vm682 = vcmp.gt.s32.totalorder %v681, 0
    %v683 = vsel %vm682, %v681, 0
    %v684 = vshrl.u32 %v683, 5
    %v685 = vand.u32 %v683, 31
    %v686 = vsub.s32 32, %v685
    %v687 = vshrl.u32 683565275, %v686
    %v688 = vshll.u32 683565275, %v685
    %v689 = vshrl.u32 2475754826, %v686
    %v690 = vor.u32 %v688, %v689
    %v691 = vshll.u32 2475754826, %v685
    %v692 = vshrl.u32 2131351028, %v686
    %v693 = vor.u32 %v691, %v692
    %v694 = vshll.u32 2131351028, %v685
    %v695 = vshrl.u32 2102212464, %v686
    %v696 = vor.u32 %v694, %v695
    %v697 = vshll.u32 2102212464, %v685
    %v698 = vshrl.u32 920167782, %v686
    %v699 = vor.u32 %v697, %v698
    %v700 = vshll.u32 920167782, %v685
    %v701 = vshrl.u32 1326507024, %v686
    %v702 = vor.u32 %v700, %v701
    %vm703 = vcmp.lt.s32.totalorder %v684, 1
    %vm704 = vcmp.lt.s32.totalorder %v684, 2
    %vm705 = vcmp.lt.s32.totalorder %v684, 3
    %vm706 = vcmp.lt.s32.totalorder %v684, 4
    %v707 = vsel %vm703, %v687, %v690
    %v708 = vsel %vm706, %v696, 2102212464
    %v709 = vsel %vm705, %v693, %v708
    %v710 = vsel %vm704, %v707, %v709
    %v711 = vsel %vm703, %v690, %v693
    %v712 = vsel %vm706, %v699, 920167782
    %v713 = vsel %vm705, %v696, %v712
    %v714 = vsel %vm704, %v711, %v713
    %v715 = vsel %vm703, %v693, %v696
    %v716 = vsel %vm706, %v702, 1326507024
    %v717 = vsel %vm705, %v699, %v716
    %v718 = vsel %vm704, %v715, %v717
    %v719 = vshll.u32 %v679, 8
    %v720 = vmul.u32.u64.compose %v719, %v718
    %v721 = vextract.low.u32 %v720
    %v722 = vextract.high.u32 %v720
    %v723 = vmul.u32.u64.compose %v719, %v714
    %v724 = vextract.low.u32 %v723
    %v725 = vextract.high.u32 %v723
    %v726 = vmul.u32 %v719, %v710
    %v727 = vadd.s32 %v722, %v724
    %vm728 = vc.u32 %v722, %v724
    %v729 = vadd.s32 %v725, 1
    %v730 = vsel %vm728, %v729, %v725
    %v731 = vadd.s32 %v726, %v730
    %v732 = vadd.s32 %v731, 536870912
    %v733 = vshrl.u32 %v732, 30
    %v734 = vshll.u32 %v733, 30
    %v735 = vsub.s32 %v731, %v734
    %vm736 = vcmp.lt.s32.totalorder %v735, 0
    %v737 = vsub.s32 0, %v735
    %v738 = vsel %vm736, %v737, %v735
    %v739 = vclz %v738
    %v740 = vsub.s32 %v739, 2
    %vm741 = vcmp.gt.s32.totalorder 0, %v740
    %v742 = vsel %vm741, 0, %v740
    %v743 = vsub.s32 32, %v742
    %v744 = vshll.u32 %v735, %v742
    %v745 = vshrl.u32 %v727, %v743
    %v746 = vor.u32 %v744, %v745
    %v747 = vsub.s32 4294967266, %v742
    %v748 = vadd.s32 %v747, 127
    %v749 = vshll.u32 %v748, 23
    %v750 = vor.u32 4788187, %v749
    %v751 = vand.u32 2147483647, %v750
    %v753 = vcvt.s32.f32 %v746
    %v754 = vmul.f32 %v753, %v751
    %v755 = vxor.u32 %v754, 2147483648
    %v756 = vsel %vm673, %v755, %v754
    %v757 = vsub.s32 4, %v733
    %v758 = vsel %vm673, %v757, %v733
    %v759 = vsel %vm672, %v653, %v756
    %v760 = vsel %vm672, 0, %v758
    %v761 = vcosq.f32.pop %v759
    %v762 = vsinq.f32.pop %v759
    %vm763 = vweird.f32 %v653
    %v764 = vadd.s32 %v760, 3
    %v765 = vand.u32 %v764, 3
    %vm766 = vcmp.lt.s32.totalorder %v765, 2
    %vm767 = vcmp.eq.s32.totalorder %v765, 0
    %v768 = vxor.u32 %v762, 2147483648
    %v769 = vsel %vm767, %v761, %v768
    %vm770 = vcmp.eq.s32.totalorder %v765, 2
    %v771 = vxor.u32 %v761, 2147483648
    %v772 = vsel %vm770, %v771, %v762
    %v773 = vsel %vm766, %v769, %v772
    %v774 = vsel %vm763, nan, %v773
    %v775 = vand.u32 2147483647, %v658
    %vm776 = vcmp.le.f32.partialorder %v775, 0.7853982
    %vm777 = vcmp.lt.s32.totalorder %v658, 0
    %v778 = vand.u32 %v658, 2139095040
    %v779 = vshrl.u32 %v778, 23
    %v780 = vsub.s32 %v779, 127
    %v781 = vand.u32 2147483647, %v658
    %v782 = vand.u32 %v781, 8388607
    %v783 = vor.u32 %v782, 8388608
    %v784 = vsub.s32 0, %v783
    %v785 = vadd.s32 %v780, 1
    %vm786 = vcmp.gt.s32.totalorder %v785, 0
    %v787 = vsel %vm786, %v785, 0
    %v788 = vshrl.u32 %v787, 5
    %v789 = vand.u32 %v787, 31
    %v790 = vsub.s32 32, %v789
    %v791 = vshrl.u32 683565275, %v790
    %v792 = vshll.u32 683565275, %v789
    %v793 = vshrl.u32 2475754826, %v790
    %v794 = vor.u32 %v792, %v793
    %v795 = vshll.u32 2475754826, %v789
    %v796 = vshrl.u32 2131351028, %v790
    %v797 = vor.u32 %v795, %v796
    %v798 = vshll.u32 2131351028, %v789
    %v799 = vshrl.u32 2102212464, %v790
    %v800 = vor.u32 %v798, %v799
    %v801 = vshll.u32 2102212464, %v789
    %v802 = vshrl.u32 920167782, %v790
    %v803 = vor.u32 %v801, %v802
    %v804 = vshll.u32 920167782, %v789
    %v805 = vshrl.u32 1326507024, %v790
    %v806 = vor.u32 %v804, %v805
    %vm807 = vcmp.lt.s32.totalorder %v788, 1
    %vm808 = vcmp.lt.s32.totalorder %v788, 2
    %vm809 = vcmp.lt.s32.totalorder %v788, 3
    %vm810 = vcmp.lt.s32.totalorder %v788, 4
    %v811 = vsel %vm807, %v791, %v794
    %v812 = vsel %vm810, %v800, 2102212464
    %v813 = vsel %vm809, %v797, %v812
    %v814 = vsel %vm808, %v811, %v813
    %v815 = vsel %vm807, %v794, %v797
    %v816 = vsel %vm810, %v803, 920167782
    %v817 = vsel %vm809, %v800, %v816
    %v818 = vsel %vm808, %v815, %v817
    %v819 = vsel %vm807, %v797, %v800
    %v820 = vsel %vm810, %v806, 1326507024
    %v821 = vsel %vm809, %v803, %v820
    %v822 = vsel %vm808, %v819, %v821
    %v823 = vshll.u32 %v783, 8
    %v824 = vmul.u32.u64.compose %v823, %v822
    %v825 = vextract.low.u32 %v824
    %v826 = vextract.high.u32 %v824
    %v827 = vmul.u32.u64.compose %v823, %v818
    %v828 = vextract.low.u32 %v827
    %v829 = vextract.high.u32 %v827
    %v830 = vmul.u32 %v823, %v814
    %v831 = vadd.s32 %v826, %v828
    %vm832 = vc.u32 %v826, %v828
    %v833 = vadd.s32 %v829, 1
    %v834 = vsel %vm832, %v833, %v829
    %v835 = vadd.s32 %v830, %v834
    %v836 = vadd.s32 %v835, 536870912
    %v837 = vshrl.u32 %v836, 30
    %v838 = vshll.u32 %v837, 30
    %v839 = vsub.s32 %v835, %v838
    %vm840 = vcmp.lt.s32.totalorder %v839, 0
    %v841 = vsub.s32 0, %v839
    %v842 = vsel %vm840, %v841, %v839
    %v843 = vclz %v842
    %v844 = vsub.s32 %v843, 2
    %vm845 = vcmp.gt.s32.totalorder 0, %v844
    %v846 = vsel %vm845, 0, %v844
    %v847 = vsub.s32 32, %v846
    %v848 = vshll.u32 %v839, %v846
    %v849 = vshrl.u32 %v831, %v847
    %v850 = vor.u32 %v848, %v849
    %v851 = vsub.s32 4294967266, %v846
    %v852 = vadd.s32 %v851, 127
    %v853 = vshll.u32 %v852, 23
    %v854 = vor.u32 4788187, %v853
    %v855 = vand.u32 2147483647, %v854
    %v857 = vcvt.s32.f32 %v850
    %v858 = vmul.f32 %v857, %v855
    %v859 = vxor.u32 %v858, 2147483648
    %v860 = vsel %vm777, %v859, %v858
    %v861 = vsub.s32 4, %v837
    %v862 = vsel %vm777, %v861, %v837
    %v863 = vsel %vm776, %v658, %v860
    %v864 = vsel %vm776, 0, %v862
    %v865 = vcosq.f32.pop %v863
    %v866 = vsinq.f32.pop %v863
    %vm867 = vweird.f32 %v658
    %v868 = vadd.s32 %v864, 3
    %v869 = vand.u32 %v868, 3
    %vm870 = vcmp.lt.s32.totalorder %v869, 2
    %vm871 = vcmp.eq.s32.totalorder %v869, 0
    %v872 = vxor.u32 %v866, 2147483648
    %v873 = vsel %vm871, %v865, %v872
    %vm874 = vcmp.eq.s32.totalorder %v869, 2
    %v875 = vxor.u32 %v865, 2147483648
    %v876 = vsel %vm874, %v875, %v866
    %v877 = vsel %vm870, %v873, %v876
    %v878 = vsel %vm867, nan, %v877
    %v879 = vand.u32 2147483647, %v663
    %vm880 = vcmp.le.f32.partialorder %v879, 0.7853982
    %vm881 = vcmp.lt.s32.totalorder %v663, 0
    %v882 = vand.u32 %v663, 2139095040
    %v883 = vshrl.u32 %v882, 23
    %v884 = vsub.s32 %v883, 127
    %v885 = vand.u32 2147483647, %v663
    %v886 = vand.u32 %v885, 8388607
    %v887 = vor.u32 %v886, 8388608
    %v888 = vsub.s32 0, %v887
    %v889 = vadd.s32 %v884, 1
    %vm890 = vcmp.gt.s32.totalorder %v889, 0
    %v891 = vsel %vm890, %v889, 0
    %v892 = vshrl.u32 %v891, 5
    %v893 = vand.u32 %v891, 31
    %v894 = vsub.s32 32, %v893
    %v895 = vshrl.u32 683565275, %v894
    %v896 = vshll.u32 683565275, %v893
    %v897 = vshrl.u32 2475754826, %v894
    %v898 = vor.u32 %v896, %v897
    %v899 = vshll.u32 2475754826, %v893
    %v900 = vshrl.u32 2131351028, %v894
    %v901 = vor.u32 %v899, %v900
    %v902 = vshll.u32 2131351028, %v893
    %v903 = vshrl.u32 2102212464, %v894
    %v904 = vor.u32 %v902, %v903
    %v905 = vshll.u32 2102212464, %v893
    %v906 = vshrl.u32 920167782, %v894
    %v907 = vor.u32 %v905, %v906
    %v908 = vshll.u32 920167782, %v893
    %v909 = vshrl.u32 1326507024, %v894
    %v910 = vor.u32 %v908, %v909
    %vm911 = vcmp.lt.s32.totalorder %v892, 1
    %vm912 = vcmp.lt.s32.totalorder %v892, 2
    %vm913 = vcmp.lt.s32.totalorder %v892, 3
    %vm914 = vcmp.lt.s32.totalorder %v892, 4
    %v915 = vsel %vm911, %v895, %v898
    %v916 = vsel %vm914, %v904, 2102212464
    %v917 = vsel %vm913, %v901, %v916
    %v918 = vsel %vm912, %v915, %v917
    %v919 = vsel %vm911, %v898, %v901
    %v920 = vsel %vm914, %v907, 920167782
    %v921 = vsel %vm913, %v904, %v920
    %v922 = vsel %vm912, %v919, %v921
    %v923 = vsel %vm911, %v901, %v904
    %v924 = vsel %vm914, %v910, 1326507024
    %v925 = vsel %vm913, %v907, %v924
    %v926 = vsel %vm912, %v923, %v925
    %v927 = vshll.u32 %v887, 8
    %v928 = vmul.u32.u64.compose %v927, %v926
    %v929 = vextract.low.u32 %v928
    %v930 = vextract.high.u32 %v928
    %v931 = vmul.u32.u64.compose %v927, %v922
    %v932 = vextract.low.u32 %v931
    %v933 = vextract.high.u32 %v931
    %v934 = vmul.u32 %v927, %v918
    %v935 = vadd.s32 %v930, %v932
    %vm936 = vc.u32 %v930, %v932
    %v937 = vadd.s32 %v933, 1
    %v938 = vsel %vm936, %v937, %v933
    %v939 = vadd.s32 %v934, %v938
    %v940 = vadd.s32 %v939, 536870912
    %v941 = vshrl.u32 %v940, 30
    %v942 = vshll.u32 %v941, 30
    %v943 = vsub.s32 %v939, %v942
    %vm944 = vcmp.lt.s32.totalorder %v943, 0
    %v945 = vsub.s32 0, %v943
    %v946 = vsel %vm944, %v945, %v943
    %v947 = vclz %v946
    %v948 = vsub.s32 %v947, 2
    %vm949 = vcmp.gt.s32.totalorder 0, %v948
    %v950 = vsel %vm949, 0, %v948
    %v951 = vsub.s32 32, %v950
    %v952 = vshll.u32 %v943, %v950
    %v953 = vshrl.u32 %v935, %v951
    %v954 = vor.u32 %v952, %v953
    %v955 = vsub.s32 4294967266, %v950
    %v956 = vadd.s32 %v955, 127
    %v957 = vshll.u32 %v956, 23
    %v958 = vor.u32 4788187, %v957
    %v959 = vand.u32 2147483647, %v958
    %v961 = vcvt.s32.f32 %v954
    %v962 = vmul.f32 %v961, %v959
    %v963 = vxor.u32 %v962, 2147483648
    %v964 = vsel %vm881, %v963, %v962
    %v965 = vsub.s32 4, %v941
    %v966 = vsel %vm881, %v965, %v941
    %v967 = vsel %vm880, %v663, %v964
    %v968 = vsel %vm880, 0, %v966
    %v969 = vcosq.f32.pop %v967
    %v970 = vsinq.f32.pop %v967
    %vm971 = vweird.f32 %v663
    %v972 = vadd.s32 %v968, 3
    %v973 = vand.u32 %v972, 3
    %vm974 = vcmp.lt.s32.totalorder %v973, 2
    %vm975 = vcmp.eq.s32.totalorder %v973, 0
    %v976 = vxor.u32 %v970, 2147483648
    %v977 = vsel %vm975, %v969, %v976
    %vm978 = vcmp.eq.s32.totalorder %v973, 2
    %v979 = vxor.u32 %v969, 2147483648
    %v980 = vsel %vm978, %v979, %v970
    %v981 = vsel %vm974, %v977, %v980
    %v982 = vsel %vm971, nan, %v981
    %v983 = vand.u32 2147483647, %v668
    %vm984 = vcmp.le.f32.partialorder %v983, 0.7853982
    %vm985 = vcmp.lt.s32.totalorder %v668, 0
    %v986 = vand.u32 %v668, 2139095040
    %v987 = vshrl.u32 %v986, 23
    %v988 = vsub.s32 %v987, 127
    %v989 = vand.u32 2147483647, %v668
    %v990 = vand.u32 %v989, 8388607
    %v991 = vor.u32 %v990, 8388608
    %v992 = vsub.s32 0, %v991
    %v993 = vadd.s32 %v988, 1
    %vm994 = vcmp.gt.s32.totalorder %v993, 0
    %v995 = vsel %vm994, %v993, 0
    %v996 = vshrl.u32 %v995, 5
    %v997 = vand.u32 %v995, 31
    %v998 = vsub.s32 32, %v997
    %v999 = vshrl.u32 683565275, %v998
    %v1000 = vshll.u32 683565275, %v997
    %v1001 = vshrl.u32 2475754826, %v998
    %v1002 = vor.u32 %v1000, %v1001
    %v1003 = vshll.u32 2475754826, %v997
    %v1004 = vshrl.u32 2131351028, %v998
    %v1005 = vor.u32 %v1003, %v1004
    %v1006 = vshll.u32 2131351028, %v997
    %v1007 = vshrl.u32 2102212464, %v998
    %v1008 = vor.u32 %v1006, %v1007
    %v1009 = vshll.u32 2102212464, %v997
    %v1010 = vshrl.u32 920167782, %v998
    %v1011 = vor.u32 %v1009, %v1010
    %v1012 = vshll.u32 920167782, %v997
    %v1013 = vshrl.u32 1326507024, %v998
    %v1014 = vor.u32 %v1012, %v1013
    %vm1015 = vcmp.lt.s32.totalorder %v996, 1
    %vm1016 = vcmp.lt.s32.totalorder %v996, 2
    %vm1017 = vcmp.lt.s32.totalorder %v996, 3
    %vm1018 = vcmp.lt.s32.totalorder %v996, 4
    %v1019 = vsel %vm1015, %v999, %v1002
    %v1020 = vsel %vm1018, %v1008, 2102212464
    %v1021 = vsel %vm1017, %v1005, %v1020
    %v1022 = vsel %vm1016, %v1019, %v1021
    %v1023 = vsel %vm1015, %v1002, %v1005
    %v1024 = vsel %vm1018, %v1011, 920167782
    %v1025 = vsel %vm1017, %v1008, %v1024
    %v1026 = vsel %vm1016, %v1023, %v1025
    %v1027 = vsel %vm1015, %v1005, %v1008
    %v1028 = vsel %vm1018, %v1014, 1326507024
    %v1029 = vsel %vm1017, %v1011, %v1028
    %v1030 = vsel %vm1016, %v1027, %v1029
    %v1031 = vshll.u32 %v991, 8
    %v1032 = vmul.u32.u64.compose %v1031, %v1030
    %v1033 = vextract.low.u32 %v1032
    %v1034 = vextract.high.u32 %v1032
    %v1035 = vmul.u32.u64.compose %v1031, %v1026
    %v1036 = vextract.low.u32 %v1035
    %v1037 = vextract.high.u32 %v1035
    %v1038 = vmul.u32 %v1031, %v1022
    %v1039 = vadd.s32 %v1034, %v1036
    %vm1040 = vc.u32 %v1034, %v1036
    %v1041 = vadd.s32 %v1037, 1
    %v1042 = vsel %vm1040, %v1041, %v1037
    %v1043 = vadd.s32 %v1038, %v1042
    %v1044 = vadd.s32 %v1043, 536870912
    %v1045 = vshrl.u32 %v1044, 30
    %v1046 = vshll.u32 %v1045, 30
    %v1047 = vsub.s32 %v1043, %v1046
    %vm1048 = vcmp.lt.s32.totalorder %v1047, 0
    %v1049 = vsub.s32 0, %v1047
    %v1050 = vsel %vm1048, %v1049, %v1047
    %v1051 = vclz %v1050
    %v1052 = vsub.s32 %v1051, 2
    %vm1053 = vcmp.gt.s32.totalorder 0, %v1052
    %v1054 = vsel %vm1053, 0, %v1052
    %v1055 = vsub.s32 32, %v1054
    %v1056 = vshll.u32 %v1047, %v1054
    %v1057 = vshrl.u32 %v1039, %v1055
    %v1058 = vor.u32 %v1056, %v1057
    %v1059 = vsub.s32 4294967266, %v1054
    %v1060 = vadd.s32 %v1059, 127
    %v1061 = vshll.u32 %v1060, 23
    %v1062 = vor.u32 4788187, %v1061
    %v1063 = vand.u32 2147483647, %v1062
    %v1065 = vcvt.s32.f32 %v1058
    %v1066 = vmul.f32 %v1065, %v1063
    %v1067 = vxor.u32 %v1066, 2147483648
    %v1068 = vsel %vm985, %v1067, %v1066
    %v1069 = vsub.s32 4, %v1045
    %v1070 = vsel %vm985, %v1069, %v1045
    %v1071 = vsel %vm984, %v668, %v1068
    %v1072 = vsel %vm984, 0, %v1070
    %v1073 = vcosq.f32.pop %v1071
    %v1074 = vsinq.f32.pop %v1071
    %vm1075 = vweird.f32 %v668
    %v1076 = vadd.s32 %v1072, 3
    %v1077 = vand.u32 %v1076, 3
    %vm1078 = vcmp.lt.s32.totalorder %v1077, 2
    %vm1079 = vcmp.eq.s32.totalorder %v1077, 0
    %v1080 = vxor.u32 %v1074, 2147483648
    %v1081 = vsel %vm1079, %v1073, %v1080
    %vm1082 = vcmp.eq.s32.totalorder %v1077, 2
    %v1083 = vxor.u32 %v1073, 2147483648
    %v1084 = vsel %vm1082, %v1083, %v1074
    %v1085 = vsel %vm1078, %v1081, %v1084
    %v1086 = vsel %vm1075, nan, %v1085
    %v1087 = vld [vmem:[%s5] sm:$0xff]
    %v1088 = vld [vmem:[%s5 + $0x8] sm:$0xff]
    %v1089 = vld [vmem:[%s5 + $0x10] sm:$0xff]
    %v1090 = vld [vmem:[%s5 + $0x18] sm:$0xff]
    %1092 = vset.pattern.permute.xlu0 0
    %1093 = vperm.xlu0 %1092, %v44
    %v1094 = vpop.permute.xlu0 %1093
    %1097 = vset.pattern.permute.xlu0 0
    %1098 = vperm.xlu0 %1097, %v45
    %v1099 = vpop.permute.xlu0 %1098
    %1102 = vset.pattern.permute.xlu0 0
    %1103 = vperm.xlu0 %1102, %v46
    %v1104 = vpop.permute.xlu0 %1103
    %1107 = vset.pattern.permute.xlu0 0
    %1108 = vperm.xlu0 %1107, %v47
    %v1109 = vpop.permute.xlu0 %1108
    %v1112 = vsel %vm573, %v1087, 0
    %v1115 = vsel %vm573, %v1088, 0
    %v1118 = vsel %vm573, %v1089, 0
    %v1121 = vsel %vm573, %v1090, 0
    %1123 = vmatprep.subr.mxu0 0.0
    %1124 = vmatpush1.msra.mxu0 %v774
    %1125 = vmatprep.subr.mxu0 0.0
    %1126 = vmatpush1.msra.mxu0 %v878
    %1127 = vmatprep.subr.mxu0 0.0
    %1128 = vmatpush1.msra.mxu0 %v982
    %1129 = vmatprep.subr.mxu0 0.0
    %1130 = vmatpush1.msra.mxu0 %v1086
    %1131 = vmatprep.subr.mxu0 0.0
    %1132 = vmatpush1.msra.mxu0 0.0
    %1133 = vmatprep.subr.mxu0 0.0
    %1134 = vmatpush1.msra.mxu0 0.0
    %1135 = vmatprep.subr.mxu0 0.0
    %1136 = vmatpush1.msra.mxu0 0.0
    %1137 = vmatprep.subr.mxu0 0.0
    %1138 = vmatpush1.msra.mxu0 0.0
    %1139 = vmatprep.subr.mxu0 0.0
    %1140 = vmatpush1.msra.mxu0 0.0
    %1141 = vmatprep.subr.mxu0 0.0
    %1142 = vmatpush1.msra.mxu0 0.0
    %1143 = vmatprep.subr.mxu0 0.0
    %1144 = vmatpush1.msra.mxu0 0.0
    %1145 = vmatprep.subr.mxu0 0.0
    %1146 = vmatpush1.msra.mxu0 0.0
    %1147 = vmatprep.subr.mxu0 0.0
    %1148 = vmatpush1.msra.mxu0 0.0
    %1149 = vmatprep.subr.mxu0 0.0
    %1150 = vmatpush1.msra.mxu0 0.0
    %1151 = vmatprep.subr.mxu0 0.0
    %1152 = vmatpush1.msra.mxu0 0.0
    %1153 = vmatprep.subr.mxu0 0.0
    %1154 = vmatpush1.msra.mxu0 0.0
    %1155 = vmatprep.subr.mxu0 0.0
    %1156 = vmatpush1.msra.mxu0 0.0
    %1157 = vmatprep.subr.mxu0 0.0
    %1158 = vmatpush1.msra.mxu0 0.0
    %1159 = vmatprep.subr.mxu0 0.0
    %1160 = vmatpush1.msra.mxu0 0.0
    %1161 = vmatprep.subr.mxu0 0.0
    %1162 = vmatpush1.msra.mxu0 0.0
    %1163 = vmatprep.subr.mxu0 0.0
    %1164 = vmatpush1.msra.mxu0 0.0
    %1165 = vmatprep.subr.mxu0 0.0
    %1166 = vmatpush1.msra.mxu0 0.0
    %1167 = vmatprep.subr.mxu0 0.0
    %1168 = vmatpush1.msra.mxu0 0.0
    %1169 = vmatprep.subr.mxu0 0.0
    %1170 = vmatpush1.msra.mxu0 0.0
    %1171 = vmatprep.subr.mxu0 0.0
    %1172 = vmatpush1.msra.mxu0 0.0
    %1173 = vmatprep.subr.mxu0 0.0
    %1174 = vmatpush1.msra.mxu0 0.0
    %1175 = vmatprep.subr.mxu0 0.0
    %1176 = vmatpush1.msra.mxu0 0.0
    %1177 = vmatprep.subr.mxu0 0.0
    %1178 = vmatpush1.msra.mxu0 0.0
    %1179 = vmatprep.subr.mxu0 0.0
    %1180 = vmatpush1.msra.mxu0 0.0
    %1181 = vmatprep.subr.mxu0 0.0
    %1182 = vmatpush1.msra.mxu0 0.0
    %1183 = vmatprep.subr.mxu0 0.0
    %1184 = vmatpush1.msra.mxu0 0.0
    %1185 = vmatprep.subr.mxu0 0.0
    %1186 = vmatpush1.msra.mxu0 0.0
    %1187 = vmatprep.mubr.f32.mxu0 0.0
    %1188 = vmatmul.mubr.f32.gmra.mrb[0].mxu0 %v1112
    %v1189 = vpop.f32.mrb[0].mxu0
    %v1190 = vadd.f32 %v1094, %v1189
    %v1191 = vpop.f32.mrb[0].mxu0
    %1192 = vmatprep.mubr.f32.mxu0 0.0
    %1193 = vmatmul.mubr.f32.gmra.mrb[0].mxu0 %v1115
    %v1194 = vpop.f32.mrb[0].mxu0
    %v1195 = vadd.f32 %v1099, %v1194
    %v1196 = vpop.f32.mrb[0].mxu0
    %1197 = vmatprep.mubr.f32.mxu0 0.0
    %1198 = vmatmul.mubr.f32.gmra.mrb[0].mxu0 %v1118
    %v1199 = vpop.f32.mrb[0].mxu0
    %v1200 = vadd.f32 %v1104, %v1199
    %v1201 = vpop.f32.mrb[0].mxu0
    %1202 = vmatprep.mubr.f32.mxu0 0.0
    %1203 = vmatmul.mubr.f32.gmra.mrb[0].mxu0 %v1121
    %v1204 = vpop.f32.mrb[0].mxu0
    %v1205 = vadd.f32 %v1109, %v1204
    %v1206 = vpop.f32.mrb[0].mxu0
    %1207 = vdwg.mxu0
    %v1208 = vand.u32 2147483647, %v1190
    %vm1209 = vcmp.le.f32.partialorder %v1208, 0.7853982
    %vm1210 = vcmp.lt.s32.totalorder %v1190, 0
    %v1211 = vand.u32 %v1190, 2139095040
    %v1212 = vshrl.u32 %v1211, 23
    %v1213 = vsub.s32 %v1212, 127
    %v1214 = vand.u32 2147483647, %v1190
    %v1215 = vand.u32 %v1214, 8388607
    %v1216 = vor.u32 %v1215, 8388608
    %v1217 = vsub.s32 0, %v1216
    %v1218 = vadd.s32 %v1213, 1
    %vm1219 = vcmp.gt.s32.totalorder %v1218, 0
    %v1220 = vsel %vm1219, %v1218, 0
    %v1221 = vshrl.u32 %v1220, 5
    %v1222 = vand.u32 %v1220, 31
    %v1223 = vsub.s32 32, %v1222
    %v1224 = vshrl.u32 683565275, %v1223
    %v1225 = vshll.u32 683565275, %v1222
    %v1226 = vshrl.u32 2475754826, %v1223
    %v1227 = vor.u32 %v1225, %v1226
    %v1228 = vshll.u32 2475754826, %v1222
    %v1229 = vshrl.u32 2131351028, %v1223
    %v1230 = vor.u32 %v1228, %v1229
    %v1231 = vshll.u32 2131351028, %v1222
    %v1232 = vshrl.u32 2102212464, %v1223
    %v1233 = vor.u32 %v1231, %v1232
    %v1234 = vshll.u32 2102212464, %v1222
    %v1235 = vshrl.u32 920167782, %v1223
    %v1236 = vor.u32 %v1234, %v1235
    %v1237 = vshll.u32 920167782, %v1222
    %v1238 = vshrl.u32 1326507024, %v1223
    %v1239 = vor.u32 %v1237, %v1238
    %vm1240 = vcmp.lt.s32.totalorder %v1221, 1
    %vm1241 = vcmp.lt.s32.totalorder %v1221, 2
    %vm1242 = vcmp.lt.s32.totalorder %v1221, 3
    %vm1243 = vcmp.lt.s32.totalorder %v1221, 4
    %v1244 = vsel %vm1240, %v1224, %v1227
    %v1245 = vsel %vm1243, %v1233, 2102212464
    %v1246 = vsel %vm1242, %v1230, %v1245
    %v1247 = vsel %vm1241, %v1244, %v1246
    %v1248 = vsel %vm1240, %v1227, %v1230
    %v1249 = vsel %vm1243, %v1236, 920167782
    %v1250 = vsel %vm1242, %v1233, %v1249
    %v1251 = vsel %vm1241, %v1248, %v1250
    %v1252 = vsel %vm1240, %v1230, %v1233
    %v1253 = vsel %vm1243, %v1239, 1326507024
    %v1254 = vsel %vm1242, %v1236, %v1253
    %v1255 = vsel %vm1241, %v1252, %v1254
    %v1256 = vshll.u32 %v1216, 8
    %v1257 = vmul.u32.u64.compose %v1256, %v1255
    %v1258 = vextract.low.u32 %v1257
    %v1259 = vextract.high.u32 %v1257
    %v1260 = vmul.u32.u64.compose %v1256, %v1251
    %v1261 = vextract.low.u32 %v1260
    %v1262 = vextract.high.u32 %v1260
    %v1263 = vmul.u32 %v1256, %v1247
    %v1264 = vadd.s32 %v1259, %v1261
    %vm1265 = vc.u32 %v1259, %v1261
    %v1266 = vadd.s32 %v1262, 1
    %v1267 = vsel %vm1265, %v1266, %v1262
    %v1268 = vadd.s32 %v1263, %v1267
    %v1269 = vadd.s32 %v1268, 536870912
    %v1270 = vshrl.u32 %v1269, 30
    %v1271 = vshll.u32 %v1270, 30
    %v1272 = vsub.s32 %v1268, %v1271
    %vm1273 = vcmp.lt.s32.totalorder %v1272, 0
    %v1274 = vsub.s32 0, %v1272
    %v1275 = vsel %vm1273, %v1274, %v1272
    %v1276 = vclz %v1275
    %v1277 = vsub.s32 %v1276, 2
    %vm1278 = vcmp.gt.s32.totalorder 0, %v1277
    %v1279 = vsel %vm1278, 0, %v1277
    %v1280 = vsub.s32 32, %v1279
    %v1281 = vshll.u32 %v1272, %v1279
    %v1282 = vshrl.u32 %v1264, %v1280
    %v1283 = vor.u32 %v1281, %v1282
    %v1284 = vsub.s32 4294967266, %v1279
    %v1285 = vadd.s32 %v1284, 127
    %v1286 = vshll.u32 %v1285, 23
    %v1287 = vor.u32 4788187, %v1286
    %v1288 = vand.u32 2147483647, %v1287
    %v1290 = vcvt.s32.f32 %v1283
    %v1291 = vmul.f32 %v1290, %v1288
    %v1292 = vxor.u32 %v1291, 2147483648
    %v1293 = vsel %vm1210, %v1292, %v1291
    %v1294 = vsub.s32 4, %v1270
    %v1295 = vsel %vm1210, %v1294, %v1270
    %v1296 = vsel %vm1209, %v1190, %v1293
    %v1297 = vsel %vm1209, 0, %v1295
    %v1298 = vcosq.f32.pop %v1296
    %v1299 = vsinq.f32.pop %v1296
    %vm1300 = vweird.f32 %v1190
    %v1301 = vadd.s32 %v1297, 3
    %v1302 = vand.u32 %v1301, 3
    %vm1303 = vcmp.lt.s32.totalorder %v1302, 2
    %vm1304 = vcmp.eq.s32.totalorder %v1302, 0
    %v1305 = vxor.u32 %v1299, 2147483648
    %v1306 = vsel %vm1304, %v1298, %v1305
    %vm1307 = vcmp.eq.s32.totalorder %v1302, 2
    %v1308 = vxor.u32 %v1298, 2147483648
    %v1309 = vsel %vm1307, %v1308, %v1299
    %v1310 = vsel %vm1303, %v1306, %v1309
    %v1311 = vsel %vm1300, nan, %v1310
    %v1312 = vand.u32 2147483647, %v1195
    %vm1313 = vcmp.le.f32.partialorder %v1312, 0.7853982
    %vm1314 = vcmp.lt.s32.totalorder %v1195, 0
    %v1315 = vand.u32 %v1195, 2139095040
    %v1316 = vshrl.u32 %v1315, 23
    %v1317 = vsub.s32 %v1316, 127
    %v1318 = vand.u32 2147483647, %v1195
    %v1319 = vand.u32 %v1318, 8388607
    %v1320 = vor.u32 %v1319, 8388608
    %v1321 = vsub.s32 0, %v1320
    %v1322 = vadd.s32 %v1317, 1
    %vm1323 = vcmp.gt.s32.totalorder %v1322, 0
    %v1324 = vsel %vm1323, %v1322, 0
    %v1325 = vshrl.u32 %v1324, 5
    %v1326 = vand.u32 %v1324, 31
    %v1327 = vsub.s32 32, %v1326
    %v1328 = vshrl.u32 683565275, %v1327
    %v1329 = vshll.u32 683565275, %v1326
    %v1330 = vshrl.u32 2475754826, %v1327
    %v1331 = vor.u32 %v1329, %v1330
    %v1332 = vshll.u32 2475754826, %v1326
    %v1333 = vshrl.u32 2131351028, %v1327
    %v1334 = vor.u32 %v1332, %v1333
    %v1335 = vshll.u32 2131351028, %v1326
    %v1336 = vshrl.u32 2102212464, %v1327
    %v1337 = vor.u32 %v1335, %v1336
    %v1338 = vshll.u32 2102212464, %v1326
    %v1339 = vshrl.u32 920167782, %v1327
    %v1340 = vor.u32 %v1338, %v1339
    %v1341 = vshll.u32 920167782, %v1326
    %v1342 = vshrl.u32 1326507024, %v1327
    %v1343 = vor.u32 %v1341, %v1342
    %vm1344 = vcmp.lt.s32.totalorder %v1325, 1
    %vm1345 = vcmp.lt.s32.totalorder %v1325, 2
    %vm1346 = vcmp.lt.s32.totalorder %v1325, 3
    %vm1347 = vcmp.lt.s32.totalorder %v1325, 4
    %v1348 = vsel %vm1344, %v1328, %v1331
    %v1349 = vsel %vm1347, %v1337, 2102212464
    %v1350 = vsel %vm1346, %v1334, %v1349
    %v1351 = vsel %vm1345, %v1348, %v1350
    %v1352 = vsel %vm1344, %v1331, %v1334
    %v1353 = vsel %vm1347, %v1340, 920167782
    %v1354 = vsel %vm1346, %v1337, %v1353
    %v1355 = vsel %vm1345, %v1352, %v1354
    %v1356 = vsel %vm1344, %v1334, %v1337
    %v1357 = vsel %vm1347, %v1343, 1326507024
    %v1358 = vsel %vm1346, %v1340, %v1357
    %v1359 = vsel %vm1345, %v1356, %v1358
    %v1360 = vshll.u32 %v1320, 8
    %v1361 = vmul.u32.u64.compose %v1360, %v1359
    %v1362 = vextract.low.u32 %v1361
    %v1363 = vextract.high.u32 %v1361
    %v1364 = vmul.u32.u64.compose %v1360, %v1355
    %v1365 = vextract.low.u32 %v1364
    %v1366 = vextract.high.u32 %v1364
    %v1367 = vmul.u32 %v1360, %v1351
    %v1368 = vadd.s32 %v1363, %v1365
    %vm1369 = vc.u32 %v1363, %v1365
    %v1370 = vadd.s32 %v1366, 1
    %v1371 = vsel %vm1369, %v1370, %v1366
    %v1372 = vadd.s32 %v1367, %v1371
    %v1373 = vadd.s32 %v1372, 536870912
    %v1374 = vshrl.u32 %v1373, 30
    %v1375 = vshll.u32 %v1374, 30
    %v1376 = vsub.s32 %v1372, %v1375
    %vm1377 = vcmp.lt.s32.totalorder %v1376, 0
    %v1378 = vsub.s32 0, %v1376
    %v1379 = vsel %vm1377, %v1378, %v1376
    %v1380 = vclz %v1379
    %v1381 = vsub.s32 %v1380, 2
    %vm1382 = vcmp.gt.s32.totalorder 0, %v1381
    %v1383 = vsel %vm1382, 0, %v1381
    %v1384 = vsub.s32 32, %v1383
    %v1385 = vshll.u32 %v1376, %v1383
    %v1386 = vshrl.u32 %v1368, %v1384
    %v1387 = vor.u32 %v1385, %v1386
    %v1388 = vsub.s32 4294967266, %v1383
    %v1389 = vadd.s32 %v1388, 127
    %v1390 = vshll.u32 %v1389, 23
    %v1391 = vor.u32 4788187, %v1390
    %v1392 = vand.u32 2147483647, %v1391
    %v1394 = vcvt.s32.f32 %v1387
    %v1395 = vmul.f32 %v1394, %v1392
    %v1396 = vxor.u32 %v1395, 2147483648
    %v1397 = vsel %vm1314, %v1396, %v1395
    %v1398 = vsub.s32 4, %v1374
    %v1399 = vsel %vm1314, %v1398, %v1374
    %v1400 = vsel %vm1313, %v1195, %v1397
    %v1401 = vsel %vm1313, 0, %v1399
    %v1402 = vcosq.f32.pop %v1400
    %v1403 = vsinq.f32.pop %v1400
    %vm1404 = vweird.f32 %v1195
    %v1405 = vadd.s32 %v1401, 3
    %v1406 = vand.u32 %v1405, 3
    %vm1407 = vcmp.lt.s32.totalorder %v1406, 2
    %vm1408 = vcmp.eq.s32.totalorder %v1406, 0
    %v1409 = vxor.u32 %v1403, 2147483648
    %v1410 = vsel %vm1408, %v1402, %v1409
    %vm1411 = vcmp.eq.s32.totalorder %v1406, 2
    %v1412 = vxor.u32 %v1402, 2147483648
    %v1413 = vsel %vm1411, %v1412, %v1403
    %v1414 = vsel %vm1407, %v1410, %v1413
    %v1415 = vsel %vm1404, nan, %v1414
    %v1416 = vand.u32 2147483647, %v1200
    %vm1417 = vcmp.le.f32.partialorder %v1416, 0.7853982
    %vm1418 = vcmp.lt.s32.totalorder %v1200, 0
    %v1419 = vand.u32 %v1200, 2139095040
    %v1420 = vshrl.u32 %v1419, 23
    %v1421 = vsub.s32 %v1420, 127
    %v1422 = vand.u32 2147483647, %v1200
    %v1423 = vand.u32 %v1422, 8388607
    %v1424 = vor.u32 %v1423, 8388608
    %v1425 = vsub.s32 0, %v1424
    %v1426 = vadd.s32 %v1421, 1
    %vm1427 = vcmp.gt.s32.totalorder %v1426, 0
    %v1428 = vsel %vm1427, %v1426, 0
    %v1429 = vshrl.u32 %v1428, 5
    %v1430 = vand.u32 %v1428, 31
    %v1431 = vsub.s32 32, %v1430
    %v1432 = vshrl.u32 683565275, %v1431
    %v1433 = vshll.u32 683565275, %v1430
    %v1434 = vshrl.u32 2475754826, %v1431
    %v1435 = vor.u32 %v1433, %v1434
    %v1436 = vshll.u32 2475754826, %v1430
    %v1437 = vshrl.u32 2131351028, %v1431
    %v1438 = vor.u32 %v1436, %v1437
    %v1439 = vshll.u32 2131351028, %v1430
    %v1440 = vshrl.u32 2102212464, %v1431
    %v1441 = vor.u32 %v1439, %v1440
    %v1442 = vshll.u32 2102212464, %v1430
    %v1443 = vshrl.u32 920167782, %v1431
    %v1444 = vor.u32 %v1442, %v1443
    %v1445 = vshll.u32 920167782, %v1430
    %v1446 = vshrl.u32 1326507024, %v1431
    %v1447 = vor.u32 %v1445, %v1446
    %vm1448 = vcmp.lt.s32.totalorder %v1429, 1
    %vm1449 = vcmp.lt.s32.totalorder %v1429, 2
    %vm1450 = vcmp.lt.s32.totalorder %v1429, 3
    %vm1451 = vcmp.lt.s32.totalorder %v1429, 4
    %v1452 = vsel %vm1448, %v1432, %v1435
    %v1453 = vsel %vm1451, %v1441, 2102212464
    %v1454 = vsel %vm1450, %v1438, %v1453
    %v1455 = vsel %vm1449, %v1452, %v1454
    %v1456 = vsel %vm1448, %v1435, %v1438
    %v1457 = vsel %vm1451, %v1444, 920167782
    %v1458 = vsel %vm1450, %v1441, %v1457
    %v1459 = vsel %vm1449, %v1456, %v1458
    %v1460 = vsel %vm1448, %v1438, %v1441
    %v1461 = vsel %vm1451, %v1447, 1326507024
    %v1462 = vsel %vm1450, %v1444, %v1461
    %v1463 = vsel %vm1449, %v1460, %v1462
    %v1464 = vshll.u32 %v1424, 8
    %v1465 = vmul.u32.u64.compose %v1464, %v1463
    %v1466 = vextract.low.u32 %v1465
    %v1467 = vextract.high.u32 %v1465
    %v1468 = vmul.u32.u64.compose %v1464, %v1459
    %v1469 = vextract.low.u32 %v1468
    %v1470 = vextract.high.u32 %v1468
    %v1471 = vmul.u32 %v1464, %v1455
    %v1472 = vadd.s32 %v1467, %v1469
    %vm1473 = vc.u32 %v1467, %v1469
    %v1474 = vadd.s32 %v1470, 1
    %v1475 = vsel %vm1473, %v1474, %v1470
    %v1476 = vadd.s32 %v1471, %v1475
    %v1477 = vadd.s32 %v1476, 536870912
    %v1478 = vshrl.u32 %v1477, 30
    %v1479 = vshll.u32 %v1478, 30
    %v1480 = vsub.s32 %v1476, %v1479
    %vm1481 = vcmp.lt.s32.totalorder %v1480, 0
    %v1482 = vsub.s32 0, %v1480
    %v1483 = vsel %vm1481, %v1482, %v1480
    %v1484 = vclz %v1483
    %v1485 = vsub.s32 %v1484, 2
    %vm1486 = vcmp.gt.s32.totalorder 0, %v1485
    %v1487 = vsel %vm1486, 0, %v1485
    %v1488 = vsub.s32 32, %v1487
    %v1489 = vshll.u32 %v1480, %v1487
    %v1490 = vshrl.u32 %v1472, %v1488
    %v1491 = vor.u32 %v1489, %v1490
    %v1492 = vsub.s32 4294967266, %v1487
    %v1493 = vadd.s32 %v1492, 127
    %v1494 = vshll.u32 %v1493, 23
    %v1495 = vor.u32 4788187, %v1494
    %v1496 = vand.u32 2147483647, %v1495
    %v1498 = vcvt.s32.f32 %v1491
    %v1499 = vmul.f32 %v1498, %v1496
    %v1500 = vxor.u32 %v1499, 2147483648
    %v1501 = vsel %vm1418, %v1500, %v1499
    %v1502 = vsub.s32 4, %v1478
    %v1503 = vsel %vm1418, %v1502, %v1478
    %v1504 = vsel %vm1417, %v1200, %v1501
    %v1505 = vsel %vm1417, 0, %v1503
    %v1506 = vcosq.f32.pop %v1504
    %v1507 = vsinq.f32.pop %v1504
    %vm1508 = vweird.f32 %v1200
    %v1509 = vadd.s32 %v1505, 3
    %v1510 = vand.u32 %v1509, 3
    %vm1511 = vcmp.lt.s32.totalorder %v1510, 2
    %vm1512 = vcmp.eq.s32.totalorder %v1510, 0
    %v1513 = vxor.u32 %v1507, 2147483648
    %v1514 = vsel %vm1512, %v1506, %v1513
    %vm1515 = vcmp.eq.s32.totalorder %v1510, 2
    %v1516 = vxor.u32 %v1506, 2147483648
    %v1517 = vsel %vm1515, %v1516, %v1507
    %v1518 = vsel %vm1511, %v1514, %v1517
    %v1519 = vsel %vm1508, nan, %v1518
    %v1520 = vand.u32 2147483647, %v1205
    %vm1521 = vcmp.le.f32.partialorder %v1520, 0.7853982
    %vm1522 = vcmp.lt.s32.totalorder %v1205, 0
    %v1523 = vand.u32 %v1205, 2139095040
    %v1524 = vshrl.u32 %v1523, 23
    %v1525 = vsub.s32 %v1524, 127
    %v1526 = vand.u32 2147483647, %v1205
    %v1527 = vand.u32 %v1526, 8388607
    %v1528 = vor.u32 %v1527, 8388608
    %v1529 = vsub.s32 0, %v1528
    %v1530 = vadd.s32 %v1525, 1
    %vm1531 = vcmp.gt.s32.totalorder %v1530, 0
    %v1532 = vsel %vm1531, %v1530, 0
    %v1533 = vshrl.u32 %v1532, 5
    %v1534 = vand.u32 %v1532, 31
    %v1535 = vsub.s32 32, %v1534
    %v1536 = vshrl.u32 683565275, %v1535
    %v1537 = vshll.u32 683565275, %v1534
    %v1538 = vshrl.u32 2475754826, %v1535
    %v1539 = vor.u32 %v1537, %v1538
    %v1540 = vshll.u32 2475754826, %v1534
    %v1541 = vshrl.u32 2131351028, %v1535
    %v1542 = vor.u32 %v1540, %v1541
    %v1543 = vshll.u32 2131351028, %v1534
    %v1544 = vshrl.u32 2102212464, %v1535
    %v1545 = vor.u32 %v1543, %v1544
    %v1546 = vshll.u32 2102212464, %v1534
    %v1547 = vshrl.u32 920167782, %v1535
    %v1548 = vor.u32 %v1546, %v1547
    %v1549 = vshll.u32 920167782, %v1534
    %v1550 = vshrl.u32 1326507024, %v1535
    %v1551 = vor.u32 %v1549, %v1550
    %vm1552 = vcmp.lt.s32.totalorder %v1533, 1
    %vm1553 = vcmp.lt.s32.totalorder %v1533, 2
    %vm1554 = vcmp.lt.s32.totalorder %v1533, 3
    %vm1555 = vcmp.lt.s32.totalorder %v1533, 4
    %v1556 = vsel %vm1552, %v1536, %v1539
    %v1557 = vsel %vm1555, %v1545, 2102212464
    %v1558 = vsel %vm1554, %v1542, %v1557
    %v1559 = vsel %vm1553, %v1556, %v1558
    %v1560 = vsel %vm1552, %v1539, %v1542
    %v1561 = vsel %vm1555, %v1548, 920167782
    %v1562 = vsel %vm1554, %v1545, %v1561
    %v1563 = vsel %vm1553, %v1560, %v1562
    %v1564 = vsel %vm1552, %v1542, %v1545
    %v1565 = vsel %vm1555, %v1551, 1326507024
    %v1566 = vsel %vm1554, %v1548, %v1565
    %v1567 = vsel %vm1553, %v1564, %v1566
    %v1568 = vshll.u32 %v1528, 8
    %v1569 = vmul.u32.u64.compose %v1568, %v1567
    %v1570 = vextract.low.u32 %v1569
    %v1571 = vextract.high.u32 %v1569
    %v1572 = vmul.u32.u64.compose %v1568, %v1563
    %v1573 = vextract.low.u32 %v1572
    %v1574 = vextract.high.u32 %v1572
    %v1575 = vmul.u32 %v1568, %v1559
    %v1576 = vadd.s32 %v1571, %v1573
    %vm1577 = vc.u32 %v1571, %v1573
    %v1578 = vadd.s32 %v1574, 1
    %v1579 = vsel %vm1577, %v1578, %v1574
    %v1580 = vadd.s32 %v1575, %v1579
    %v1581 = vadd.s32 %v1580, 536870912
    %v1582 = vshrl.u32 %v1581, 30
    %v1583 = vshll.u32 %v1582, 30
    %v1584 = vsub.s32 %v1580, %v1583
    %vm1585 = vcmp.lt.s32.totalorder %v1584, 0
    %v1586 = vsub.s32 0, %v1584
    %v1587 = vsel %vm1585, %v1586, %v1584
    %v1588 = vclz %v1587
    %v1589 = vsub.s32 %v1588, 2
    %vm1590 = vcmp.gt.s32.totalorder 0, %v1589
    %v1591 = vsel %vm1590, 0, %v1589
    %v1592 = vsub.s32 32, %v1591
    %v1593 = vshll.u32 %v1584, %v1591
    %v1594 = vshrl.u32 %v1576, %v1592
    %v1595 = vor.u32 %v1593, %v1594
    %v1596 = vsub.s32 4294967266, %v1591
    %v1597 = vadd.s32 %v1596, 127
    %v1598 = vshll.u32 %v1597, 23
    %v1599 = vor.u32 4788187, %v1598
    %v1600 = vand.u32 2147483647, %v1599
    %v1602 = vcvt.s32.f32 %v1595
    %v1603 = vmul.f32 %v1602, %v1600
    %v1604 = vxor.u32 %v1603, 2147483648
    %v1605 = vsel %vm1522, %v1604, %v1603
    %v1606 = vsub.s32 4, %v1582
    %v1607 = vsel %vm1522, %v1606, %v1582
    %v1608 = vsel %vm1521, %v1205, %v1605
    %v1609 = vsel %vm1521, 0, %v1607
    %v1610 = vcosq.f32.pop %v1608
    %v1611 = vsinq.f32.pop %v1608
    %vm1612 = vweird.f32 %v1205
    %v1613 = vadd.s32 %v1609, 3
    %v1614 = vand.u32 %v1613, 3
    %vm1615 = vcmp.lt.s32.totalorder %v1614, 2
    %vm1616 = vcmp.eq.s32.totalorder %v1614, 0
    %v1617 = vxor.u32 %v1611, 2147483648
    %v1618 = vsel %vm1616, %v1610, %v1617
    %vm1619 = vcmp.eq.s32.totalorder %v1614, 2
    %v1620 = vxor.u32 %v1610, 2147483648
    %v1621 = vsel %vm1619, %v1620, %v1611
    %v1622 = vsel %vm1615, %v1618, %v1621
    %v1623 = vsel %vm1612, nan, %v1622
    %v1624 = vld [vmem:[%s7] sm:$0xff]
    %v1625 = vld [vmem:[%s7 + $0x8] sm:$0xff]
    %v1626 = vld [vmem:[%s7 + $0x10] sm:$0xff]
    %v1627 = vld [vmem:[%s7 + $0x18] sm:$0xff]
    %1629 = vset.pattern.permute.xlu0 0
    %1630 = vperm.xlu0 %1629, %v1624
    %v1631 = vpop.permute.xlu0 %1630
    %1634 = vset.pattern.permute.xlu0 0
    %1635 = vperm.xlu0 %1634, %v1625
    %v1636 = vpop.permute.xlu0 %1635
    %1639 = vset.pattern.permute.xlu0 0
    %1640 = vperm.xlu0 %1639, %v1626
    %v1641 = vpop.permute.xlu0 %1640
    %1644 = vset.pattern.permute.xlu0 0
    %1645 = vperm.xlu0 %1644, %v1627
    %v1646 = vpop.permute.xlu0 %1645
    %v1648 = vmul.f32 %v1311, %v1631
    %v1649 = vmul.f32 %v1415, %v1636
    %v1650 = vmul.f32 %v1519, %v1641
    %v1651 = vmul.f32 %v1623, %v1646
    %v1652 = vadd.f32 %v1648, %v1649
    %v1653 = vadd.f32 %v1652, %v1650
    %v1654 = vadd.f32 %v1653, %v1651
    %v1655 = vrot.slane %v1654, 4
    %v1656 = vadd.f32 %v1654, %v1655
    %v1657 = vrot.slane %v1656, 2
    %v1658 = vadd.f32 %v1656, %v1657
    %v1659 = vrot.slane %v1658, 1
    %v1660 = vadd.f32 %v1658, %v1659
    %1662 = vset.pattern.permute.xlu0 0
    %1663 = vperm.xlu0 %1662, %v48
    %v1664 = vpop.permute.xlu0 %1663
    %v1666 = vlaneseq
    %v1667 = vshrl.u32 %v1666, 7
    %v1668 = vsub.s32 0, %v1667
    %v1669 = vrot.slane %v1664, %v1668
    %v1670 = vadd.f32 %v1660, %v1669
    %1671 = vst [vmem:[#allocation3] sm:$0x1] %v1670
    // Predicated region
    $region38: #{tpu_custom_call.1} parent=1 // pred_check
      _
    $region39: #{tpu_custom_call.1} parent=1 // pred_check_branch
      %1673 = sbr.rel (0) target = $region41
    $region40: #{tpu_custom_call.1} parent=1 // pred_region
      %s1675 = ssub.s32 16, 16
      %1676 = vsyncadd [#allocation4], %s1675
      %s1678 = sshll.u32 [#allocation3], 4
      %s1679 = int_to_ptr.vmem [resolvable:$true] %s1678
      %1681 = dma.vmem_to_hbm [thread:$0]  %s1679, 16, %s9, [#allocation4]
    $region41: #{tpu_custom_call.1} parent=1 // pred_fallthru
      _
    // Predicated region
    $region42: #{tpu_custom_call.1} parent=1 // pred_check
      _
    $region43: #{tpu_custom_call.1} parent=1 // pred_check_branch
      %1683 = sbr.rel (0) target = $region45
    $region44: #{tpu_custom_call.1} parent=1 // pred_region
      %1684 = dma.done [#allocation4], 16
    $region45: #{tpu_custom_call.1} parent=1 // pred_fallthru
      _
    %1685 = vsyncpa [#allocation4], 1

</llo_original>
